<compile_context>
chip_gen: v7x
topology: tpu7x:2x2x1
jax: 0.10.0
libtpu: 0.0.40
codegen_flags: <defaults>
</compile_context>

<pallas_src>
import functools
import math

import jax
import jax.numpy as jnp
import numpy as np
from jax.experimental import pallas as pl
from jax.experimental.pallas import tpu as pltpu

_INV_SQRT2 = 0.7071067811865476


def _round_up(x, m):
    return ((x + m - 1) // m) * m


def _gelu_exact(z):
    return 0.5 * z * (1.0 + jax.lax.erf(z * _INV_SQRT2))


def _choose_block_n(n, per_sample_bytes, target_bytes=512 * 1024, max_unroll=8):
    """Samples per grid step: aim for >=512 KB moved per step, keep >=2 grid steps
    (v7x has two TensorCores) and cap the in-kernel unroll; must divide N."""
    want = max(1, min(max_unroll, target_bytes // max(per_sample_bytes, 1)))
    if n >= 2:
        want = min(want, n // 2)
    want = max(1, want)
    bn = 1
    for d in range(1, min(n, want) + 1):
        if n % d == 0:
            bn = d
    return bn


_COMPILER_PARAMS = pltpu.CompilerParams(
    dimension_semantics=("parallel",),           # shard sample blocks across TCs
    vmem_limit_bytes=32 * 1024 * 1024,           # explicit; safe on 64 MiB v7x VMEM
)


# ----------------------------------------------------------------------------
# Pallas kernels
# ----------------------------------------------------------------------------
def _conv_stats_kernel(*refs, kh, kw, w0, mout, m_in, cin, cin_p, fuse_act):
    """block_n samples of: [fused prev-stage GELU(A*x+B)] -> kh x kw VALID conv
    (single merged matmul over an in-VMEM im2col patch) -> masked per-sample
    sum / sum-of-squares statistics.

    refs (fuse_act=True):  x, ab, w2d, mask, y, stats, row_scr, patch_scr
    refs (fuse_act=False): x,     w2d, mask, y, stats, row_scr, patch_scr

    x:      (block_n, cin, m_in)     input rows on the original (H0, W0) grid
    ab:     (block_n, cin, 2)        folded prev-stage affine (A, B)
    w2d:    (cout, kh*kw*cin_p)      flattened conv weights (zero pad channels)
    mask:   (1, mout)                1.0 on valid output columns, 0.0 elsewhere
    y:      (block_n, cout, mout)    raw conv output (lane-dense)
    stats:  (block_n, cout, 128)     lane 0 = sum, lane 1 = sum of squares
    row_scr:   (cin_p, R)            zero-padded (activated) row scratch
    patch_scr: (kh*kw*cin_p, mout)   im2col patch scratch
    """
    if fuse_act:
        x_ref, ab_ref, w_ref, m_ref, y_ref, s_ref, row_scr, patch_scr = refs
    else:
        x_ref, w_ref, m_ref, y_ref, s_ref, row_scr, patch_scr = refs
        ab_ref = None

    block_n = x_ref.shape[0]
    cout = y_ref.shape[1]
    r = row_scr.shape[1]

    # Zero the row scratch once per grid step: the shift-window lane tail
    # [m_in, R) and channel-pad sublanes [cin, cin_p) stay zero; the data region
    # is fully overwritten for every sample below.
    row_scr[...] = jnp.zeros((cin_p, r), jnp.float32)

    mask = m_ref[...]                                           # (1, mout)
    lane = jax.lax.broadcasted_iota(jnp.int32, (cout, 128), 1)
    is_l0 = (lane == 0).astype(jnp.float32)
    is_l1 = (lane == 1).astype(jnp.float32)
    w2d = w_ref[...]                                            # resident weights

    for b in range(block_n):
        row = x_ref[b]                                          # (cin, m_in)
        if fuse_act:
            ab = ab_ref[b]                                      # (cin, 2)
            row = _gelu_exact(row * ab[:, 0:1] + ab[:, 1:2])    # prev-stage epilogue
        row_scr[pl.ds(0, cin), pl.ds(0, m_in)] = row

        # im2col: kh*kw shifted views of the padded row -> one MXU matmul.
        for dh in range(kh):
            for dw in range(kw):
                t = dh * kw + dw
                patch_scr[pl.ds(t * cin_p, cin_p), :] = \
                    row_scr[:, pl.ds(dh * w0 + dw, mout)]

        acc = jnp.dot(w2d, patch_scr[...], preferred_element_type=jnp.float32)
        y_ref[b] = acc                                          # (cout, mout)

        masked = acc * mask                                     # 0/1 mask, no select
        ssum = jnp.sum(masked, axis=1, keepdims=True)           # (cout, 1)
        ssq = jnp.sum(masked * acc, axis=1, keepdims=True)      # mask * acc^2
        s_ref[b] = ssum * is_l0 + ssq * is_l1                   # one full-width store


def _affine_gelu_kernel(y_ref, ab_ref, o_ref):
    """out = GELU(y * A + B) for a block of samples (lane-dense output)."""
    for b in range(y_ref.shape[0]):
        ab = ab_ref[b]
        o_ref[b] = _gelu_exact(y_ref[b] * ab[:, 0:1] + ab[:, 1:2])


# ----------------------------------------------------------------------------
# pallas_call wrappers
# ----------------------------------------------------------------------------
def conv_stats(x_rows, w2d, mask, ab, *, kh, kw, w0, mout, cin, cin_p, block_n):
    n, _, m_in = x_rows.shape
    cout = w2d.shape[0]
    smax = (kh - 1) * w0 + (kw - 1)
    r = _round_up(mout + smax, 128)
    fuse_act = ab is not None

    kern = functools.partial(_conv_stats_kernel, kh=kh, kw=kw, w0=w0, mout=mout,
                             m_in=m_in, cin=cin, cin_p=cin_p, fuse_act=fuse_act)

    in_specs = [pl.BlockSpec((block_n, cin, m_in), lambda i: (i, 0, 0))]
    inputs = [x_rows]
    if fuse_act:
        in_specs.append(pl.BlockSpec((block_n, cin, 2), lambda i: (i, 0, 0)))
        inputs.append(ab)
    in_specs += [pl.BlockSpec(w2d.shape, lambda i: (0, 0)),     # weights, resident
                 pl.BlockSpec((1, mout), lambda i: (0, 0))]     # mask, resident
    inputs += [w2d, mask]

    return pl.pallas_call(
        kern,
        grid=(n // block_n,),
        out_shape=(jax.ShapeDtypeStruct((n, cout, mout), jnp.float32),
                   jax.ShapeDtypeStruct((n, cout, 128), jnp.float32)),
        in_specs=in_specs,
        out_specs=(pl.BlockSpec((block_n, cout, mout), lambda i: (i, 0, 0)),
                   pl.BlockSpec((block_n, cout, 128), lambda i: (i, 0, 0))),
        scratch_shapes=[pltpu.VMEM((cin_p, r), jnp.float32),
                        pltpu.VMEM((kh * kw * cin_p, mout), jnp.float32)],
        compiler_params=_COMPILER_PARAMS,
    )(*inputs)


def affine_gelu(y, ab, *, block_n):
    n, c, mout = y.shape
    return pl.pallas_call(
        _affine_gelu_kernel,
        grid=(n // block_n,),
        out_shape=jax.ShapeDtypeStruct((n, c, mout), jnp.float32),
        in_specs=[pl.BlockSpec((block_n, c, mout), lambda i: (i, 0, 0)),
                  pl.BlockSpec((block_n, c, 2), lambda i: (i, 0, 0))],
        out_specs=pl.BlockSpec((block_n, c, mout), lambda i: (i, 0, 0)),
        compiler_params=_COMPILER_PARAMS,
    )(y, ab)


# ----------------------------------------------------------------------------
# Tiny O(N*C) glue: BN finalize, 3-tap ECA channel conv + sigmoid, gate folding
# ----------------------------------------------------------------------------
def eca_gate(y, w_eca):
    """y [N, C]; w_eca [3]: nn.Conv1d(1,1,3,pad=1,bias=False) over channels + sigmoid."""
    yp = jnp.pad(y, ((0, 0), (1, 1)))
    conv = w_eca[0] * yp[:, :-2] + w_eca[1] * yp[:, 1:-1] + w_eca[2] * yp[:, 2:]
    return jax.nn.sigmoid(conv)


def _fold_bn_eca(stats, gamma, beta, w_eca, n, ho, wo, eps):
    """Per-sample masked sum / sumsq -> folded affine A = bn_scale*gate,
    B = bn_shift*gate (batch-statistics BatchNorm, biased variance)."""
    s_sum = stats[:, :, 0]                          # [N, C]
    s_sq = stats[:, :, 1]                           # [N, C]
    cnt = float(n * ho * wo)
    mu = jnp.sum(s_sum, axis=0) / cnt
    var = jnp.sum(s_sq, axis=0) / cnt - mu * mu
    scale = gamma / jnp.sqrt(var + eps)
    shift = beta - mu * scale
    smean = s_sum / float(ho * wo)                  # per-sample spatial mean of conv
    gate = eca_gate(smean * scale[None, :] + shift[None, :], w_eca)   # [N, C]
    return jnp.stack([scale[None, :] * gate, shift[None, :] * gate], axis=-1)


def conv_block(x_rows, w_oihw, gamma, beta, w_eca, ab_prev, *, kh, kw, h0, w0,
               ho, wo, block_n, eps=1e-5):
    """One conv stage (with the PREVIOUS stage's epilogue fused in via ab_prev).
    Returns (raw conv output [N, Cout, Mout], folded affine ab [N, Cout, 2])."""
    n, cin, _ = x_rows.shape
    cout = w_oihw.shape[0]
    cin_p = _round_up(cin, 8)                       # sublane-aligned patch rows
    mout = _round_up(h0 * w0, 128)

    # (O, I, KH, KW) -> (O, KH*KW*Cin_p); zero columns for the channel pad
    w_t = jnp.transpose(w_oihw, (0, 2, 3, 1))       # (O, KH, KW, I)
    if cin_p > cin:
        w_t = jnp.pad(w_t, ((0, 0), (0, 0), (0, 0), (0, cin_p - cin)))
    w2d = w_t.reshape(cout, kh * kw * cin_p)

    # validity mask over output columns on the original (h0, w0) grid
    mcol = jnp.arange(mout)
    valid = ((mcol // w0) < ho) & ((mcol % w0) < wo) & (mcol < h0 * w0)
    mask = valid.astype(jnp.float32).reshape(1, mout)

    y, stats = conv_stats(x_rows, w2d, mask, ab_prev, kh=kh, kw=kw, w0=w0,
                          mout=mout, cin=cin, cin_p=cin_p, block_n=block_n)
    ab = _fold_bn_eca(stats, gamma, beta, w_eca, n, ho, wo, eps)
    return y, ab


def conv2_layer_forward(x_nchw, params, *, block_n=None):
    """Full Conv2_Layer forward. Input/output NCHW like PyTorch."""
    ks = params["kernel_size"]
    kh, kw = (ks, ks) if isinstance(ks, int) else (ks[0], ks[1])
    n, cin, h0, w0 = x_nchw.shape
    c0 = params["w1"].shape[0]
    c1 = params["w2"].shape[0]
    ho1, wo1 = h0 - kh + 1, w0 - kw + 1
    ho2, wo2 = ho1 - kh + 1, wo1 - kw + 1
    mout = _round_up(h0 * w0, 128)

    if block_n is None:
        per_sample = 4 * mout * (cin + 2 * max(c0, c1))   # rough bytes per sample/step
        block_n = _choose_block_n(n, per_sample)

    # NCHW -> [N, C, H0*W0] rows: pure reshape, no HBM padding pass (the kernel
    # zero-pads the shift-window tail in VMEM).
    x_rows = x_nchw.reshape(n, cin, h0 * w0)

    y1, ab1 = conv_block(x_rows, params["w1"], params["gamma1"], params["beta1"],
                         params["eca1_w"], None, kh=kh, kw=kw, h0=h0, w0=w0,
                         ho=ho1, wo=wo1, block_n=block_n)
    # Stage-1's BN/ECA/GELU epilogue is fused into the stage-2 conv kernel (ab1).
    y2, ab2 = conv_block(y1, params["w2"], params["gamma2"], params["beta2"],
                         params["eca2_w"], ab1, kh=kh, kw=kw, h0=h0, w0=w0,
                         ho=ho2, wo=wo2, block_n=block_n)
    out_rows = affine_gelu(y2, ab2, block_n=block_n)      # [N, C1, Mout]

    # unpack: valid (ho2, wo2) region of the original (h0, w0) grid
    out = out_rows[:, :, :h0 * w0].reshape(n, c1, h0, w0)[:, :, :ho2, :wo2]
    return out


# ----------------------------------------------------------------------------
# Pure-JAX reference (with conv bias, to validate the bias-cancellation claim)
# ----------------------------------------------------------------------------
def reference_forward(x, params, eps=1e-5):
    def conv(x, w, b):
        y = jax.lax.conv_general_dilated(
            x, w, (1, 1), "VALID", dimension_numbers=("NCHW", "OIHW", "NCHW"),
            precision=jax.lax.Precision.HIGHEST)
        return y + b.reshape(1, -1, 1, 1)

    def bn(x, gamma, beta):
        mu = x.mean(axis=(0, 2, 3), keepdims=True)
        var = ((x - mu) ** 2).mean(axis=(0, 2, 3), keepdims=True)
        return gamma.reshape(1, -1, 1, 1) * (x - mu) / jnp.sqrt(var + eps) \
            + beta.reshape(1, -1, 1, 1)

    def eca(x, w):
        g = eca_gate(x.mean(axis=(2, 3)), w)
        return x * g[:, :, None, None]

    def gelu(x):
        return 0.5 * x * (1.0 + jax.lax.erf(x * _INV_SQRT2))

    h = gelu(eca(bn(conv(x, params["w1"], params["b1"]),
                    params["gamma1"], params["beta1"]), params["eca1_w"]))
    h = gelu(eca(bn(conv(h, params["w2"], params["b2"]),
                    params["gamma2"], params["beta2"]), params["eca2_w"]))
    return h


# ----------------------------------------------------------------------------
def make_params(key, in_channels, out_channels, kernel_size):
    c0, c1 = out_channels
    k = kernel_size
    ks = jax.random.split(key, 6)
    s1 = 1.0 / math.sqrt(in_channels * k * k)
    s2 = 1.0 / math.sqrt(c0 * k * k)
    return {
        "kernel_size": k,
        "w1": jax.random.uniform(ks[0], (c0, in_channels, k, k), jnp.float32, -s1, s1),
        "b1": jax.random.uniform(ks[1], (c0,), jnp.float32, -s1, s1),
        "gamma1": jnp.ones((c0,), jnp.float32),
        "beta1": jnp.zeros((c0,), jnp.float32),
        "eca1_w": jax.random.uniform(ks[2], (3,), jnp.float32, -1.0, 1.0) * (1.0 / math.sqrt(3.0)),
        "w2": jax.random.uniform(ks[3], (c1, c0, k, k), jnp.float32, -s2, s2),
        "b2": jax.random.uniform(ks[4], (c1,), jnp.float32, -s2, s2),
        "gamma2": jnp.ones((c1,), jnp.float32),
        "beta2": jnp.zeros((c1,), jnp.float32),
        "eca2_w": jax.random.uniform(ks[5], (3,), jnp.float32, -1.0, 1.0) * (1.0 / math.sqrt(3.0)),
    }


if __name__ == "__main__":
    key = jax.random.PRNGKey(0)
    k_x, k_p = jax.random.split(key)

    # Conv2_Layer(in_channels=4, out_channels=[8, 16], kernel_size=3)
    N, Cin, H, W = 2, 4, 16, 16
    params = make_params(k_p, Cin, [8, 16], 3)
    x = jax.random.normal(k_x, (N, Cin, H, W), jnp.float32)

    fwd = jax.jit(lambda xx: conv2_layer_forward(xx, params))
    out = jax.block_until_ready(fwd(x))
    ref = jax.block_until_ready(reference_forward(x, params))

    assert out.shape == (N, 16, H - 4, W - 4), out.shape
    np.testing.assert_allclose(np.asarray(out), np.asarray(ref), rtol=2e-4, atol=2e-4)
    print("KERNEL_OK")
</pallas_src>

<mosaic_0001>
module attributes {stable_mosaic.version = 11 : i64} {
  func.func @_conv_stats_kernel(%arg0: i32, %arg1: memref<1x4x256xf32, #tpu.memory_space<vmem>>, %arg2: memref<8x72xf32, #tpu.memory_space<vmem>>, %arg3: memref<1x256xf32, #tpu.memory_space<vmem>>, %arg4: memref<1x8x256xf32, #tpu.memory_space<vmem>>, %arg5: memref<1x8x128xf32, #tpu.memory_space<vmem>>, %arg6: memref<8x384xf32, #tpu.memory_space<vmem>>, %arg7: memref<72x256xf32, #tpu.memory_space<vmem>>) attributes {dimension_semantics = [#tpu.dimension_semantics<parallel>], iteration_bounds = array<i64: 2>, scalar_prefetch = 0 : i64, scratch_operands = 2 : i64, tpu.core_type = #tpu.core_type<tc>, window_params = [{transform_indices = @transform_0, window_bounds = array<i64: 1, 4, 256>}, {pipeline_mode = #tpu.pipeline_mode<synchronous>, transform_indices = @transform_1, window_bounds = array<i64: 8, 72>}, {pipeline_mode = #tpu.pipeline_mode<synchronous>, transform_indices = @transform_2, window_bounds = array<i64: 1, 256>}, {transform_indices = @transform_3, window_bounds = array<i64: 1, 8, 256>}, {transform_indices = @transform_4, window_bounds = array<i64: 1, 8, 128>}]} {
    %cst = arith.constant 0.000000e+00 : f32
    %0 = vector.broadcast %cst : f32 to vector<8x384xf32>
    %c0 = arith.constant 0 : index
    %c0_0 = arith.constant 0 : index
    %1 = vector.load %arg6[%c0, %c0_0] : memref<8x384xf32, #tpu.memory_space<vmem>>, vector<8x384xf32>
    tpu.vector_store %arg6[%c0, %c0_0], %0 {strides = array<i32>} : memref<8x384xf32, #tpu.memory_space<vmem>>, vector<8x384xf32>,
    %c0_1 = arith.constant 0 : index
    %c0_2 = arith.constant 0 : index
    %2 = vector.load %arg3[%c0_1, %c0_2] : memref<1x256xf32, #tpu.memory_space<vmem>>, vector<1x256xf32>
    %3 = tpu.iota {dimensions = array<i32: 1>} : vector<8x128xi32>
    %c0_i32 = arith.constant 0 : i32
    %4 = vector.broadcast %c0_i32 : i32 to vector<8x128xi32>
    %5 = arith.cmpi eq, %3, %4 : vector<8x128xi32>
    %6 = arith.extui %5 : vector<8x128xi1> to vector<8x128xi32>
    %7 = arith.sitofp %6 : vector<8x128xi32> to vector<8x128xf32>
    %c1_i32 = arith.constant 1 : i32
    %8 = vector.broadcast %c1_i32 : i32 to vector<8x128xi32>
    %9 = arith.cmpi eq, %3, %8 : vector<8x128xi32>
    %10 = arith.extui %9 : vector<8x128xi1> to vector<8x128xi32>
    %11 = arith.sitofp %10 : vector<8x128xi32> to vector<8x128xf32>
    %c0_3 = arith.constant 0 : index
    %c0_4 = arith.constant 0 : index
    %12 = vector.load %arg2[%c0_3, %c0_4] : memref<8x72xf32, #tpu.memory_space<vmem>>, vector<8x72xf32>
    %c0_5 = arith.constant 0 : index
    %c0_6 = arith.constant 0 : index
    %c0_7 = arith.constant 0 : index
    %13 = vector.load %arg1[%c0_5, %c0_6, %c0_7] : memref<1x4x256xf32, #tpu.memory_space<vmem>>, vector<1x4x256xf32>
    %14 = vector.shape_cast %13 : vector<1x4x256xf32> to vector<4x256xf32>
    %c0_8 = arith.constant 0 : index
    %c0_9 = arith.constant 0 : index
    %15 = vector.load %arg6[%c0_8, %c0_9] : memref<8x384xf32, #tpu.memory_space<vmem>>, vector<4x256xf32>
    tpu.vector_store %arg6[%c0_8, %c0_9], %14 {strides = array<i32>} : memref<8x384xf32, #tpu.memory_space<vmem>>, vector<4x256xf32>,
    %c0_10 = arith.constant 0 : index
    %c0_11 = arith.constant 0 : index
    %16 = vector.load %arg6[%c0_10, %c0_11] : memref<8x384xf32, #tpu.memory_space<vmem>>, vector<8x256xf32>
    %c0_12 = arith.constant 0 : index
    %c0_13 = arith.constant 0 : index
    %17 = vector.load %arg7[%c0_12, %c0_13] : memref<72x256xf32, #tpu.memory_space<vmem>>, vector<8x256xf32>
    tpu.vector_store %arg7[%c0_12, %c0_13], %16 {strides = array<i32>} : memref<72x256xf32, #tpu.memory_space<vmem>>, vector<8x256xf32>,
    %c0_14 = arith.constant 0 : index
    %c1 = arith.constant 1 : index
    %18 = vector.load %arg6[%c0_14, %c1] : memref<8x384xf32, #tpu.memory_space<vmem>>, vector<8x256xf32>
    %c8 = arith.constant 8 : index
    %c0_15 = arith.constant 0 : index
    %19 = vector.load %arg7[%c8, %c0_15] : memref<72x256xf32, #tpu.memory_space<vmem>>, vector<8x256xf32>
    tpu.vector_store %arg7[%c8, %c0_15], %18 {strides = array<i32>} : memref<72x256xf32, #tpu.memory_space<vmem>>, vector<8x256xf32>,
    %c0_16 = arith.constant 0 : index
    %c2 = arith.constant 2 : index
    %20 = vector.load %arg6[%c0_16, %c2] : memref<8x384xf32, #tpu.memory_space<vmem>>, vector<8x256xf32>
    %c16 = arith.constant 16 : index
    %c0_17 = arith.constant 0 : index
    %21 = vector.load %arg7[%c16, %c0_17] : memref<72x256xf32, #tpu.memory_space<vmem>>, vector<8x256xf32>
    tpu.vector_store %arg7[%c16, %c0_17], %20 {strides = array<i32>} : memref<72x256xf32, #tpu.memory_space<vmem>>, vector<8x256xf32>,
    %c0_18 = arith.constant 0 : index
    %c16_19 = arith.constant 16 : index
    %22 = vector.load %arg6[%c0_18, %c16_19] : memref<8x384xf32, #tpu.memory_space<vmem>>, vector<8x256xf32>
    %c24 = arith.constant 24 : index
    %c0_20 = arith.constant 0 : index
    %23 = vector.load %arg7[%c24, %c0_20] : memref<72x256xf32, #tpu.memory_space<vmem>>, vector<8x256xf32>
    tpu.vector_store %arg7[%c24, %c0_20], %22 {strides = array<i32>} : memref<72x256xf32, #tpu.memory_space<vmem>>, vector<8x256xf32>,
    %c0_21 = arith.constant 0 : index
    %c17 = arith.constant 17 : index
    %24 = vector.load %arg6[%c0_21, %c17] : memref<8x384xf32, #tpu.memory_space<vmem>>, vector<8x256xf32>
    %c32 = arith.constant 32 : index
    %c0_22 = arith.constant 0 : index
    %25 = vector.load %arg7[%c32, %c0_22] : memref<72x256xf32, #tpu.memory_space<vmem>>, vector<8x256xf32>
    tpu.vector_store %arg7[%c32, %c0_22], %24 {strides = array<i32>} : memref<72x256xf32, #tpu.memory_space<vmem>>, vector<8x256xf32>,
    %c0_23 = arith.constant 0 : index
    %c18 = arith.constant 18 : index
    %26 = vector.load %arg6[%c0_23, %c18] : memref<8x384xf32, #tpu.memory_space<vmem>>, vector<8x256xf32>
    %c40 = arith.constant 40 : index
    %c0_24 = arith.constant 0 : index
    %27 = vector.load %arg7[%c40, %c0_24] : memref<72x256xf32, #tpu.memory_space<vmem>>, vector<8x256xf32>
    tpu.vector_store %arg7[%c40, %c0_24], %26 {strides = array<i32>} : memref<72x256xf32, #tpu.memory_space<vmem>>, vector<8x256xf32>,
    %c0_25 = arith.constant 0 : index
    %c32_26 = arith.constant 32 : index
    %28 = vector.load %arg6[%c0_25, %c32_26] : memref<8x384xf32, #tpu.memory_space<vmem>>, vector<8x256xf32>
    %c48 = arith.constant 48 : index
    %c0_27 = arith.constant 0 : index
    %29 = vector.load %arg7[%c48, %c0_27] : memref<72x256xf32, #tpu.memory_space<vmem>>, vector<8x256xf32>
    tpu.vector_store %arg7[%c48, %c0_27], %28 {strides = array<i32>} : memref<72x256xf32, #tpu.memory_space<vmem>>, vector<8x256xf32>,
    %c0_28 = arith.constant 0 : index
    %c33 = arith.constant 33 : index
    %30 = vector.load %arg6[%c0_28, %c33] : memref<8x384xf32, #tpu.memory_space<vmem>>, vector<8x256xf32>
    %c56 = arith.constant 56 : index
    %c0_29 = arith.constant 0 : index
    %31 = vector.load %arg7[%c56, %c0_29] : memref<72x256xf32, #tpu.memory_space<vmem>>, vector<8x256xf32>
    tpu.vector_store %arg7[%c56, %c0_29], %30 {strides = array<i32>} : memref<72x256xf32, #tpu.memory_space<vmem>>, vector<8x256xf32>,
    %c0_30 = arith.constant 0 : index
    %c34 = arith.constant 34 : index
    %32 = vector.load %arg6[%c0_30, %c34] : memref<8x384xf32, #tpu.memory_space<vmem>>, vector<8x256xf32>
    %c64 = arith.constant 64 : index
    %c0_31 = arith.constant 0 : index
    %33 = vector.load %arg7[%c64, %c0_31] : memref<72x256xf32, #tpu.memory_space<vmem>>, vector<8x256xf32>
    tpu.vector_store %arg7[%c64, %c0_31], %32 {strides = array<i32>} : memref<72x256xf32, #tpu.memory_space<vmem>>, vector<8x256xf32>,
    %c0_32 = arith.constant 0 : index
    %c0_33 = arith.constant 0 : index
    %34 = vector.load %arg7[%c0_32, %c0_33] : memref<72x256xf32, #tpu.memory_space<vmem>>, vector<72x256xf32>
    %cst_34 = arith.constant dense<0.000000e+00> : vector<8x256xf32>
    %35 = tpu.matmul %12, %34, %cst_34 {dimension_numbers = #tpu.dot_dimension_numbers<[1], [0], [0], [1], [0, 0, 1, 1], [], []>} : vector<8x72xf32>, vector<72x256xf32>, vector<8x256xf32> -> vector<8x256xf32>
    %c0_35 = arith.constant 0 : index
    %c0_36 = arith.constant 0 : index
    %c0_37 = arith.constant 0 : index
    %36 = vector.load %arg4[%c0_35, %c0_36, %c0_37] : memref<1x8x256xf32, #tpu.memory_space<vmem>>, vector<1x8x256xf32>
    %37 = vector.shape_cast %36 : vector<1x8x256xf32> to vector<8x256xf32>
    %38 = vector.shape_cast %35 : vector<8x256xf32> to vector<1x8x256xf32>
    tpu.vector_store %arg4[%c0_35, %c0_36, %c0_37], %38 {strides = array<i32>} : memref<1x8x256xf32, #tpu.memory_space<vmem>>, vector<1x8x256xf32>,
    %39 = vector.broadcast %2 : vector<1x256xf32> to vector<8x256xf32>
    %40 = arith.mulf %35, %39 : vector<8x256xf32>
    %cst_38 = arith.constant dense<0.000000e+00> : vector<8xf32>
    %41 = vector.multi_reduction <add>, %40, %cst_38 [1] : vector<8x256xf32> to vector<8xf32>
    %42 = vector.shape_cast %41 : vector<8xf32> to vector<8x1xf32>
    %43 = arith.mulf %40, %35 : vector<8x256xf32>
    %cst_39 = arith.constant dense<0.000000e+00> : vector<8xf32>
    %44 = vector.multi_reduction <add>, %43, %cst_39 [1] : vector<8x256xf32> to vector<8xf32>
    %45 = vector.shape_cast %44 : vector<8xf32> to vector<8x1xf32>
    %46 = vector.broadcast %42 : vector<8x1xf32> to vector<8x128xf32>
    %47 = arith.mulf %46, %7 : vector<8x128xf32>
    %48 = vector.broadcast %45 : vector<8x1xf32> to vector<8x128xf32>
    %49 = arith.mulf %48, %11 : vector<8x128xf32>
    %50 = arith.addf %47, %49 : vector<8x128xf32>
    %c0_40 = arith.constant 0 : index
    %c0_41 = arith.constant 0 : index
    %c0_42 = arith.constant 0 : index
    %51 = vector.load %arg5[%c0_40, %c0_41, %c0_42] : memref<1x8x128xf32, #tpu.memory_space<vmem>>, vector<1x8x128xf32>
    %52 = vector.shape_cast %51 : vector<1x8x128xf32> to vector<8x128xf32>
    %53 = vector.shape_cast %50 : vector<8x128xf32> to vector<1x8x128xf32>
    tpu.vector_store %arg5[%c0_40, %c0_41, %c0_42], %53 {strides = array<i32>} : memref<1x8x128xf32, #tpu.memory_space<vmem>>, vector<1x8x128xf32>,
    return
  }
  func.func @transform_0(%arg0: i32) -> (i32, i32, i32) {
    %c0_i32 = arith.constant 0 : i32
    %c0_i32_0 = arith.constant 0 : i32
    %c0_i32_1 = arith.constant 0 : i32
    return %arg0, %c0_i32, %c0_i32_0 : i32, i32, i32
  }
  func.func @transform_1(%arg0: i32) -> (i32, i32) {
    %c0_i32 = arith.constant 0 : i32
    %c0_i32_0 = arith.constant 0 : i32
    %c0_i32_1 = arith.constant 0 : i32
    return %c0_i32, %c0_i32_0 : i32, i32
  }
  func.func @transform_2(%arg0: i32) -> (i32, i32) {
    %c0_i32 = arith.constant 0 : i32
    %c0_i32_0 = arith.constant 0 : i32
    %c0_i32_1 = arith.constant 0 : i32
    return %c0_i32, %c0_i32_0 : i32, i32
  }
  func.func @transform_3(%arg0: i32) -> (i32, i32, i32) {
    %c0_i32 = arith.constant 0 : i32
    %c0_i32_0 = arith.constant 0 : i32
    %c0_i32_1 = arith.constant 0 : i32
    return %arg0, %c0_i32, %c0_i32_0 : i32, i32, i32
  }
  func.func @transform_4(%arg0: i32) -> (i32, i32, i32) {
    %c0_i32 = arith.constant 0 : i32
    %c0_i32_0 = arith.constant 0 : i32
    %c0_i32_1 = arith.constant 0 : i32
    return %arg0, %c0_i32, %c0_i32_0 : i32, i32, i32
  }
}

module attributes {stable_mosaic.version = 11 : i64} {
  func.func @_affine_gelu_kernel(%arg0: i32, %arg1: memref<1x16x256xf32, #tpu.memory_space<vmem>>, %arg2: memref<1x16x2xf32, #tpu.memory_space<vmem>>, %arg3: memref<1x16x256xf32, #tpu.memory_space<vmem>>) attributes {dimension_semantics = [#tpu.dimension_semantics<parallel>], iteration_bounds = array<i64: 2>, scalar_prefetch = 0 : i64, scratch_operands = 0 : i64, tpu.core_type = #tpu.core_type<tc>, window_params = [{transform_indices = @transform_0, window_bounds = array<i64: 1, 16, 256>}, {transform_indices = @transform_1, window_bounds = array<i64: 1, 16, 2>}, {transform_indices = @transform_2, window_bounds = array<i64: 1, 16, 256>}]} {
    %c0 = arith.constant 0 : index
    %c0_0 = arith.constant 0 : index
    %c0_1 = arith.constant 0 : index
    %0 = vector.load %arg2[%c0, %c0_0, %c0_1] : memref<1x16x2xf32, #tpu.memory_space<vmem>>, vector<1x16x2xf32>
    %1 = vector.shape_cast %0 : vector<1x16x2xf32> to vector<16x2xf32>
    %c0_2 = arith.constant 0 : index
    %c0_3 = arith.constant 0 : index
    %c0_4 = arith.constant 0 : index
    %2 = vector.load %arg1[%c0_2, %c0_3, %c0_4] : memref<1x16x256xf32, #tpu.memory_space<vmem>>, vector<1x16x256xf32>
    %3 = vector.shape_cast %2 : vector<1x16x256xf32> to vector<16x256xf32>
    %4 = vector.extract_strided_slice %1 {offsets = [0, 0], sizes = [16, 1], strides = [1, 1]} : vector<16x2xf32> to vector<16x1xf32>
    %5 = vector.broadcast %4 : vector<16x1xf32> to vector<16x256xf32>
    %6 = arith.mulf %3, %5 : vector<16x256xf32>
    %7 = vector.extract_strided_slice %1 {offsets = [0, 1], sizes = [16, 1], strides = [1, 1]} : vector<16x2xf32> to vector<16x1xf32>
    %8 = vector.broadcast %7 : vector<16x1xf32> to vector<16x256xf32>
    %9 = arith.addf %6, %8 : vector<16x256xf32>
    %cst = arith.constant 5.000000e-01 : f32
    %10 = vector.broadcast %cst : f32 to vector<16x256xf32>
    %11 = arith.mulf %10, %9 : vector<16x256xf32>
    %cst_5 = arith.constant 0.707106769 : f32
    %12 = vector.broadcast %cst_5 : f32 to vector<16x256xf32>
    %13 = arith.mulf %9, %12 : vector<16x256xf32>
    %14 = math.erf %13 : vector<16x256xf32>
    %cst_6 = arith.constant 1.000000e+00 : f32
    %15 = vector.broadcast %cst_6 : f32 to vector<16x256xf32>
    %16 = arith.addf %15, %14 : vector<16x256xf32>
    %17 = arith.mulf %11, %16 : vector<16x256xf32>
    %c0_7 = arith.constant 0 : index
    %c0_8 = arith.constant 0 : index
    %c0_9 = arith.constant 0 : index
    %18 = vector.load %arg3[%c0_7, %c0_8, %c0_9] : memref<1x16x256xf32, #tpu.memory_space<vmem>>, vector<1x16x256xf32>
    %19 = vector.shape_cast %18 : vector<1x16x256xf32> to vector<16x256xf32>
    %20 = vector.shape_cast %17 : vector<16x256xf32> to vector<1x16x256xf32>
    tpu.vector_store %arg3[%c0_7, %c0_8, %c0_9], %20 {strides = array<i32>} : memref<1x16x256xf32, #tpu.memory_space<vmem>>, vector<1x16x256xf32>,
    return
  }
  func.func @transform_0(%arg0: i32) -> (i32, i32, i32) {
    %c0_i32 = arith.constant 0 : i32
    %c0_i32_0 = arith.constant 0 : i32
    %c0_i32_1 = arith.constant 0 : i32
    return %arg0, %c0_i32, %c0_i32_0 : i32, i32, i32
  }
  func.func @transform_1(%arg0: i32) -> (i32, i32, i32) {
    %c0_i32 = arith.constant 0 : i32
    %c0_i32_0 = arith.constant 0 : i32
    %c0_i32_1 = arith.constant 0 : i32
    return %arg0, %c0_i32, %c0_i32_0 : i32, i32, i32
  }
  func.func @transform_2(%arg0: i32) -> (i32, i32, i32) {
    %c0_i32 = arith.constant 0 : i32
    %c0_i32_0 = arith.constant 0 : i32
    %c0_i32_1 = arith.constant 0 : i32
    return %arg0, %c0_i32, %c0_i32_0 : i32, i32, i32
  }
}

module attributes {stable_mosaic.version = 11 : i64} {
  func.func @_conv_stats_kernel(%arg0: i32, %arg1: memref<1x8x256xf32, #tpu.memory_space<vmem>>, %arg2: memref<1x8x2xf32, #tpu.memory_space<vmem>>, %arg3: memref<16x72xf32, #tpu.memory_space<vmem>>, %arg4: memref<1x256xf32, #tpu.memory_space<vmem>>, %arg5: memref<1x16x256xf32, #tpu.memory_space<vmem>>, %arg6: memref<1x16x128xf32, #tpu.memory_space<vmem>>, %arg7: memref<8x384xf32, #tpu.memory_space<vmem>>, %arg8: memref<72x256xf32, #tpu.memory_space<vmem>>) attributes {dimension_semantics = [#tpu.dimension_semantics<parallel>], iteration_bounds = array<i64: 2>, scalar_prefetch = 0 : i64, scratch_operands = 2 : i64, tpu.core_type = #tpu.core_type<tc>, window_params = [{transform_indices = @transform_0, window_bounds = array<i64: 1, 8, 256>}, {transform_indices = @transform_1, window_bounds = array<i64: 1, 8, 2>}, {pipeline_mode = #tpu.pipeline_mode<synchronous>, transform_indices = @transform_2, window_bounds = array<i64: 16, 72>}, {pipeline_mode = #tpu.pipeline_mode<synchronous>, transform_indices = @transform_3, window_bounds = array<i64: 1, 256>}, {transform_indices = @transform_4, window_bounds = array<i64: 1, 16, 256>}, {transform_indices = @transform_5, window_bounds = array<i64: 1, 16, 128>}]} {
    %cst = arith.constant 0.000000e+00 : f32
    %0 = vector.broadcast %cst : f32 to vector<8x384xf32>
    %c0 = arith.constant 0 : index
    %c0_0 = arith.constant 0 : index
    %1 = vector.load %arg7[%c0, %c0_0] : memref<8x384xf32, #tpu.memory_space<vmem>>, vector<8x384xf32>
    tpu.vector_store %arg7[%c0, %c0_0], %0 {strides = array<i32>} : memref<8x384xf32, #tpu.memory_space<vmem>>, vector<8x384xf32>,
    %c0_1 = arith.constant 0 : index
    %c0_2 = arith.constant 0 : index
    %2 = vector.load %arg4[%c0_1, %c0_2] : memref<1x256xf32, #tpu.memory_space<vmem>>, vector<1x256xf32>
    %3 = tpu.iota {dimensions = array<i32: 1>} : vector<16x128xi32>
    %c0_i32 = arith.constant 0 : i32
    %4 = vector.broadcast %c0_i32 : i32 to vector<16x128xi32>
    %5 = arith.cmpi eq, %3, %4 : vector<16x128xi32>
    %6 = arith.extui %5 : vector<16x128xi1> to vector<16x128xi32>
    %7 = arith.sitofp %6 : vector<16x128xi32> to vector<16x128xf32>
    %c1_i32 = arith.constant 1 : i32
    %8 = vector.broadcast %c1_i32 : i32 to vector<16x128xi32>
    %9 = arith.cmpi eq, %3, %8 : vector<16x128xi32>
    %10 = arith.extui %9 : vector<16x128xi1> to vector<16x128xi32>
    %11 = arith.sitofp %10 : vector<16x128xi32> to vector<16x128xf32>
    %c0_3 = arith.constant 0 : index
    %c0_4 = arith.constant 0 : index
    %12 = vector.load %arg3[%c0_3, %c0_4] : memref<16x72xf32, #tpu.memory_space<vmem>>, vector<16x72xf32>
    %c0_5 = arith.constant 0 : index
    %c0_6 = arith.constant 0 : index
    %c0_7 = arith.constant 0 : index
    %13 = vector.load %arg1[%c0_5, %c0_6, %c0_7] : memref<1x8x256xf32, #tpu.memory_space<vmem>>, vector<1x8x256xf32>
    %14 = vector.shape_cast %13 : vector<1x8x256xf32> to vector<8x256xf32>
    %c0_8 = arith.constant 0 : index
    %c0_9 = arith.constant 0 : index
    %c0_10 = arith.constant 0 : index
    %15 = vector.load %arg2[%c0_8, %c0_9, %c0_10] : memref<1x8x2xf32, #tpu.memory_space<vmem>>, vector<1x8x2xf32>
    %16 = vector.shape_cast %15 : vector<1x8x2xf32> to vector<8x2xf32>
    %17 = vector.extract_strided_slice %16 {offsets = [0, 0], sizes = [8, 1], strides = [1, 1]} : vector<8x2xf32> to vector<8x1xf32>
    %18 = vector.broadcast %17 : vector<8x1xf32> to vector<8x256xf32>
    %19 = arith.mulf %14, %18 : vector<8x256xf32>
    %20 = vector.extract_strided_slice %16 {offsets = [0, 1], sizes = [8, 1], strides = [1, 1]} : vector<8x2xf32> to vector<8x1xf32>
    %21 = vector.broadcast %20 : vector<8x1xf32> to vector<8x256xf32>
    %22 = arith.addf %19, %21 : vector<8x256xf32>
    %cst_11 = arith.constant 5.000000e-01 : f32
    %23 = vector.broadcast %cst_11 : f32 to vector<8x256xf32>
    %24 = arith.mulf %23, %22 : vector<8x256xf32>
    %cst_12 = arith.constant 0.707106769 : f32
    %25 = vector.broadcast %cst_12 : f32 to vector<8x256xf32>
    %26 = arith.mulf %22, %25 : vector<8x256xf32>
    %27 = math.erf %26 : vector<8x256xf32>
    %cst_13 = arith.constant 1.000000e+00 : f32
    %28 = vector.broadcast %cst_13 : f32 to vector<8x256xf32>
    %29 = arith.addf %28, %27 : vector<8x256xf32>
    %30 = arith.mulf %24, %29 : vector<8x256xf32>
    %c0_14 = arith.constant 0 : index
    %c0_15 = arith.constant 0 : index
    %31 = vector.load %arg7[%c0_14, %c0_15] : memref<8x384xf32, #tpu.memory_space<vmem>>, vector<8x256xf32>
    tpu.vector_store %arg7[%c0_14, %c0_15], %30 {strides = array<i32>} : memref<8x384xf32, #tpu.memory_space<vmem>>, vector<8x256xf32>,
    %c0_16 = arith.constant 0 : index
    %c0_17 = arith.constant 0 : index
    %32 = vector.load %arg7[%c0_16, %c0_17] : memref<8x384xf32, #tpu.memory_space<vmem>>, vector<8x256xf32>
    %c0_18 = arith.constant 0 : index
    %c0_19 = arith.constant 0 : index
    %33 = vector.load %arg8[%c0_18, %c0_19] : memref<72x256xf32, #tpu.memory_space<vmem>>, vector<8x256xf32>
    tpu.vector_store %arg8[%c0_18, %c0_19], %32 {strides = array<i32>} : memref<72x256xf32, #tpu.memory_space<vmem>>, vector<8x256xf32>,
    %c0_20 = arith.constant 0 : index
    %c1 = arith.constant 1 : index
    %34 = vector.load %arg7[%c0_20, %c1] : memref<8x384xf32, #tpu.memory_space<vmem>>, vector<8x256xf32>
    %c8 = arith.constant 8 : index
    %c0_21 = arith.constant 0 : index
    %35 = vector.load %arg8[%c8, %c0_21] : memref<72x256xf32, #tpu.memory_space<vmem>>, vector<8x256xf32>
    tpu.vector_store %arg8[%c8, %c0_21], %34 {strides = array<i32>} : memref<72x256xf32, #tpu.memory_space<vmem>>, vector<8x256xf32>,
    %c0_22 = arith.constant 0 : index
    %c2 = arith.constant 2 : index
    %36 = vector.load %arg7[%c0_22, %c2] : memref<8x384xf32, #tpu.memory_space<vmem>>, vector<8x256xf32>
    %c16 = arith.constant 16 : index
    %c0_23 = arith.constant 0 : index
    %37 = vector.load %arg8[%c16, %c0_23] : memref<72x256xf32, #tpu.memory_space<vmem>>, vector<8x256xf32>
    tpu.vector_store %arg8[%c16, %c0_23], %36 {strides = array<i32>} : memref<72x256xf32, #tpu.memory_space<vmem>>, vector<8x256xf32>,
    %c0_24 = arith.constant 0 : index
    %c16_25 = arith.constant 16 : index
    %38 = vector.load %arg7[%c0_24, %c16_25] : memref<8x384xf32, #tpu.memory_space<vmem>>, vector<8x256xf32>
    %c24 = arith.constant 24 : index
    %c0_26 = arith.constant 0 : index
    %39 = vector.load %arg8[%c24, %c0_26] : memref<72x256xf32, #tpu.memory_space<vmem>>, vector<8x256xf32>
    tpu.vector_store %arg8[%c24, %c0_26], %38 {strides = array<i32>} : memref<72x256xf32, #tpu.memory_space<vmem>>, vector<8x256xf32>,
    %c0_27 = arith.constant 0 : index
    %c17 = arith.constant 17 : index
    %40 = vector.load %arg7[%c0_27, %c17] : memref<8x384xf32, #tpu.memory_space<vmem>>, vector<8x256xf32>
    %c32 = arith.constant 32 : index
    %c0_28 = arith.constant 0 : index
    %41 = vector.load %arg8[%c32, %c0_28] : memref<72x256xf32, #tpu.memory_space<vmem>>, vector<8x256xf32>
    tpu.vector_store %arg8[%c32, %c0_28], %40 {strides = array<i32>} : memref<72x256xf32, #tpu.memory_space<vmem>>, vector<8x256xf32>,
    %c0_29 = arith.constant 0 : index
    %c18 = arith.constant 18 : index
    %42 = vector.load %arg7[%c0_29, %c18] : memref<8x384xf32, #tpu.memory_space<vmem>>, vector<8x256xf32>
    %c40 = arith.constant 40 : index
    %c0_30 = arith.constant 0 : index
    %43 = vector.load %arg8[%c40, %c0_30] : memref<72x256xf32, #tpu.memory_space<vmem>>, vector<8x256xf32>
    tpu.vector_store %arg8[%c40, %c0_30], %42 {strides = array<i32>} : memref<72x256xf32, #tpu.memory_space<vmem>>, vector<8x256xf32>,
    %c0_31 = arith.constant 0 : index
    %c32_32 = arith.constant 32 : index
    %44 = vector.load %arg7[%c0_31, %c32_32] : memref<8x384xf32, #tpu.memory_space<vmem>>, vector<8x256xf32>
    %c48 = arith.constant 48 : index
    %c0_33 = arith.constant 0 : index
    %45 = vector.load %arg8[%c48, %c0_33] : memref<72x256xf32, #tpu.memory_space<vmem>>, vector<8x256xf32>
    tpu.vector_store %arg8[%c48, %c0_33], %44 {strides = array<i32>} : memref<72x256xf32, #tpu.memory_space<vmem>>, vector<8x256xf32>,
    %c0_34 = arith.constant 0 : index
    %c33 = arith.constant 33 : index
    %46 = vector.load %arg7[%c0_34, %c33] : memref<8x384xf32, #tpu.memory_space<vmem>>, vector<8x256xf32>
    %c56 = arith.constant 56 : index
    %c0_35 = arith.constant 0 : index
    %47 = vector.load %arg8[%c56, %c0_35] : memref<72x256xf32, #tpu.memory_space<vmem>>, vector<8x256xf32>
    tpu.vector_store %arg8[%c56, %c0_35], %46 {strides = array<i32>} : memref<72x256xf32, #tpu.memory_space<vmem>>, vector<8x256xf32>,
    %c0_36 = arith.constant 0 : index
    %c34 = arith.constant 34 : index
    %48 = vector.load %arg7[%c0_36, %c34] : memref<8x384xf32, #tpu.memory_space<vmem>>, vector<8x256xf32>
    %c64 = arith.constant 64 : index
    %c0_37 = arith.constant 0 : index
    %49 = vector.load %arg8[%c64, %c0_37] : memref<72x256xf32, #tpu.memory_space<vmem>>, vector<8x256xf32>
    tpu.vector_store %arg8[%c64, %c0_37], %48 {strides = array<i32>} : memref<72x256xf32, #tpu.memory_space<vmem>>, vector<8x256xf32>,
    %c0_38 = arith.constant 0 : index
    %c0_39 = arith.constant 0 : index
    %50 = vector.load %arg8[%c0_38, %c0_39] : memref<72x256xf32, #tpu.memory_space<vmem>>, vector<72x256xf32>
    %cst_40 = arith.constant dense<0.000000e+00> : vector<16x256xf32>
    %51 = tpu.matmul %12, %50, %cst_40 {dimension_numbers = #tpu.dot_dimension_numbers<[1], [0], [0], [1], [0, 0, 1, 1], [], []>} : vector<16x72xf32>, vector<72x256xf32>, vector<16x256xf32> -> vector<16x256xf32>
    %c0_41 = arith.constant 0 : index
    %c0_42 = arith.constant 0 : index
    %c0_43 = arith.constant 0 : index
    %52 = vector.load %arg5[%c0_41, %c0_42, %c0_43] : memref<1x16x256xf32, #tpu.memory_space<vmem>>, vector<1x16x256xf32>
    %53 = vector.shape_cast %52 : vector<1x16x256xf32> to vector<16x256xf32>
    %54 = vector.shape_cast %51 : vector<16x256xf32> to vector<1x16x256xf32>
    tpu.vector_store %arg5[%c0_41, %c0_42, %c0_43], %54 {strides = array<i32>} : memref<1x16x256xf32, #tpu.memory_space<vmem>>, vector<1x16x256xf32>,
    %55 = vector.broadcast %2 : vector<1x256xf32> to vector<16x256xf32>
    %56 = arith.mulf %51, %55 : vector<16x256xf32>
    %cst_44 = arith.constant dense<0.000000e+00> : vector<16xf32>
    %57 = vector.multi_reduction <add>, %56, %cst_44 [1] : vector<16x256xf32> to vector<16xf32>
    %58 = vector.shape_cast %57 : vector<16xf32> to vector<16x1xf32>
    %59 = arith.mulf %56, %51 : vector<16x256xf32>
    %cst_45 = arith.constant dense<0.000000e+00> : vector<16xf32>
    %60 = vector.multi_reduction <add>, %59, %cst_45 [1] : vector<16x256xf32> to vector<16xf32>
    %61 = vector.shape_cast %60 : vector<16xf32> to vector<16x1xf32>
    %62 = vector.broadcast %58 : vector<16x1xf32> to vector<16x128xf32>
    %63 = arith.mulf %62, %7 : vector<16x128xf32>
    %64 = vector.broadcast %61 : vector<16x1xf32> to vector<16x128xf32>
    %65 = arith.mulf %64, %11 : vector<16x128xf32>
    %66 = arith.addf %63, %65 : vector<16x128xf32>
    %c0_46 = arith.constant 0 : index
    %c0_47 = arith.constant 0 : index
    %c0_48 = arith.constant 0 : index
    %67 = vector.load %arg6[%c0_46, %c0_47, %c0_48] : memref<1x16x128xf32, #tpu.memory_space<vmem>>, vector<1x16x128xf32>
    %68 = vector.shape_cast %67 : vector<1x16x128xf32> to vector<16x128xf32>
    %69 = vector.shape_cast %66 : vector<16x128xf32> to vector<1x16x128xf32>
    tpu.vector_store %arg6[%c0_46, %c0_47, %c0_48], %69 {strides = array<i32>} : memref<1x16x128xf32, #tpu.memory_space<vmem>>, vector<1x16x128xf32>,
    return
  }
  func.func @transform_0(%arg0: i32) -> (i32, i32, i32) {
    %c0_i32 = arith.constant 0 : i32
    %c0_i32_0 = arith.constant 0 : i32
    %c0_i32_1 = arith.constant 0 : i32
    return %arg0, %c0_i32, %c0_i32_0 : i32, i32, i32
  }
  func.func @transform_1(%arg0: i32) -> (i32, i32, i32) {
    %c0_i32 = arith.constant 0 : i32
    %c0_i32_0 = arith.constant 0 : i32
    %c0_i32_1 = arith.constant 0 : i32
    return %arg0, %c0_i32, %c0_i32_0 : i32, i32, i32
  }
  func.func @transform_2(%arg0: i32) -> (i32, i32) {
    %c0_i32 = arith.constant 0 : i32
    %c0_i32_0 = arith.constant 0 : i32
    %c0_i32_1 = arith.constant 0 : i32
    return %c0_i32, %c0_i32_0 : i32, i32
  }
  func.func @transform_3(%arg0: i32) -> (i32, i32) {
    %c0_i32 = arith.constant 0 : i32
    %c0_i32_0 = arith.constant 0 : i32
    %c0_i32_1 = arith.constant 0 : i32
    return %c0_i32, %c0_i32_0 : i32, i32
  }
  func.func @transform_4(%arg0: i32) -> (i32, i32, i32) {
    %c0_i32 = arith.constant 0 : i32
    %c0_i32_0 = arith.constant 0 : i32
    %c0_i32_1 = arith.constant 0 : i32
    return %arg0, %c0_i32, %c0_i32_0 : i32, i32, i32
  }
  func.func @transform_5(%arg0: i32) -> (i32, i32, i32) {
    %c0_i32 = arith.constant 0 : i32
    %c0_i32_0 = arith.constant 0 : i32
    %c0_i32_1 = arith.constant 0 : i32
    return %arg0, %c0_i32, %c0_i32_0 : i32, i32, i32
  }
}

</mosaic_0001>

<llo_original>
// kernel: _lambda_.5
$region0: #{_lambda_.5}
  #allocation0 [shape = 'u32[]', space=smem, size = 0x4, offset = 0x4, fixed_abs, tag = 'smem constant byte address 0x4 - core index']
  #allocation1 [shape = 'u32[144,128]{1,0:T(1,128)}', space=vmem, size = 0x12000, scoped, tag = 'internal scratch']
  %s0 = inlined_call_operand.vmem [shape: f32[2,16,256], index: 0, kind: input, shape index: {}]
  %s1 = inlined_call_operand.vmem [shape: f32[2,16,2], index: 1, kind: input, shape index: {}]
  %s2 = inlined_call_operand.vmem [shape: f32[2,16,256], index: 2, kind: output, shape index: {}]
  %s3 = sld [smem:[#allocation0]]
  $region41: #{_lambda_.5} parent=0
    _
  %s5 = ssub.s32 1, %s3
  %s6 = scalar_select 0, %s5, %s3
  loop: start=0, step=1, limit=4
  $region2: #{_lambda_.5} parent=0 // loop_pre_header
    _
  $region3: #{_lambda_.5} parent=0 // loop_header
    %s8 = sphi 0, %s12
    %p9 = scmp.ge.s32.totalorder %s8, 4
    %s18 = sphi 0, %s20
    %s21 = sphi 0, %s18
    %s22 = sphi 0, %s21
    %s38 = sphi 0, %s22
    %s44 = sphi 0, %s46
    %s47 = sphi 0, %s44
    %s48 = sphi 0, %s47
    %s64 = sphi 0, %s48
    %s70 = sphi 0, %s72
    %s73 = sphi 0, %s70
    %s74 = sphi 0, %s73
    %s90 = sphi 0, %s74
  $region4: #{_lambda_.5} parent=0 // loop_header_branch
    %11 = sbr.rel (%p9) target = $region8
  $region5: #{_lambda_.5} parent=0 // loop_body
    %s13 = ssub.s32 %s8, 1
    %s14 = ssub.s32 %s8, 2
    %s15 = sadd.s32 %s8, 1
    %s16 = ssub.s32 %s8, %s15
    %p17 = scmp.eq.s32.totalorder %s16, 0
    %s19 = sadd.s32 %s18, 1
    %s20 = scalar_select %p17, %s18, %s19
    %p23 = pneg %p17
    %p24 = scmp.eq.s32.totalorder %s8, 1
    %p25 = por %p23, %p24
    %p26 = scmp.ne.s32.totalorder %s18, %s21
    %p27 = scmp.eq.s32.totalorder %s8, 0
    %p28 = por %p26, %p27
    %p29 = scmp.ne.s32.totalorder %s18, %s21
    %p30 = scmp.eq.s32.totalorder %s13, 1
    %p31 = por %p29, %p30
    %p32 = scmp.ne.s32.totalorder %s21, %s22
    %p33 = scmp.eq.s32.totalorder %s13, 0
    %p34 = por %p32, %p33
    %p35 = scmp.ne.s32.totalorder %s21, %s22
    %p36 = scmp.eq.s32.totalorder %s14, 1
    %p37 = por %p35, %p36
    %p39 = scmp.ne.s32.totalorder %s22, %s38
    %p40 = scmp.eq.s32.totalorder %s14, 0
    %p41 = por %p39, %p40
    %s42 = ssub.s32 %s8, %s15
    %p43 = scmp.eq.s32.totalorder %s42, 0
    %s45 = sadd.s32 %s44, 1
    %s46 = scalar_select %p43, %s44, %s45
    %p49 = pneg %p43
    %p50 = scmp.eq.s32.totalorder %s8, 1
    %p51 = por %p49, %p50
    %p52 = scmp.ne.s32.totalorder %s44, %s47
    %p53 = scmp.eq.s32.totalorder %s8, 0
    %p54 = por %p52, %p53
    %p55 = scmp.ne.s32.totalorder %s44, %s47
    %p56 = scmp.eq.s32.totalorder %s13, 1
    %p57 = por %p55, %p56
    %p58 = scmp.ne.s32.totalorder %s47, %s48
    %p59 = scmp.eq.s32.totalorder %s13, 0
    %p60 = por %p58, %p59
    %p61 = scmp.ne.s32.totalorder %s47, %s48
    %p62 = scmp.eq.s32.totalorder %s14, 1
    %p63 = por %p61, %p62
    %p65 = scmp.ne.s32.totalorder %s48, %s64
    %p66 = scmp.eq.s32.totalorder %s14, 0
    %p67 = por %p65, %p66
    %s68 = ssub.s32 %s8, %s15
    %p69 = scmp.eq.s32.totalorder %s68, 0
    %s71 = sadd.s32 %s70, 1
    %s72 = scalar_select %p69, %s70, %s71
    %p75 = pneg %p69
    %p76 = scmp.eq.s32.totalorder %s8, 1
    %p77 = por %p75, %p76
    %p78 = scmp.ne.s32.totalorder %s70, %s73
    %p79 = scmp.eq.s32.totalorder %s8, 0
    %p80 = por %p78, %p79
    %p81 = scmp.ne.s32.totalorder %s70, %s73
    %p82 = scmp.eq.s32.totalorder %s13, 1
    %p83 = por %p81, %p82
    %p84 = scmp.ne.s32.totalorder %s73, %s74
    %p85 = scmp.eq.s32.totalorder %s13, 0
    %p86 = por %p84, %p85
    %p87 = scmp.ne.s32.totalorder %s73, %s74
    %p88 = scmp.eq.s32.totalorder %s14, 1
    %p89 = por %p87, %p88
    %p91 = scmp.ne.s32.totalorder %s74, %s90
    %p92 = scmp.eq.s32.totalorder %s14, 0
    %p93 = por %p91, %p92
    %p94 = scmp.le.s32.totalorder 1, %s8
    %p95 = scmp.lt.s32.totalorder %s8, 3
    %p96 = pnand %p94, %p95
    %p97 = pneg %p96
    // Predicated region
    $region9: #{_lambda_.5} parent=5 // pred_check
      _
    $region10: #{_lambda_.5} parent=5 // pred_check_branch
      %99 = sbr.rel (%p96) target = $region12
    $region11: #{_lambda_.5} parent=5 // pred_region
      %s100 = ssub.s32 %s8, 1
    $region12: #{_lambda_.5} parent=5 // pred_fallthru
      _
    %p101 = scmp.lt.s32.totalorder %s8, 2
    // Predicated region
    $region13: #{_lambda_.5} parent=5 // pred_check
      %p102 = pneg %p101
    $region14: #{_lambda_.5} parent=5 // pred_check_branch
      %104 = sbr.rel (%p102) target = $region16
    $region15: #{_lambda_.5} parent=5 // pred_region
      // Predicated region
      $region17: #{_lambda_.5} parent=15 // pred_check
        %p105 = pneg %p28
      $region18: #{_lambda_.5} parent=15 // pred_check_branch
        %107 = sbr.rel (%p105) target = $region20
      $region19: #{_lambda_.5} parent=15 // pred_region
        %p108 = scmp.lt.s32.totalorder %s8, 1
        %s109 = scalar_select %p108, %s8, 1
        %s110 = smul.addr %s109, 4
        %s111 = smul.addr %s110, 8
        %s112 = scalar_lea.vmem %s0, %s111
      $region20: #{_lambda_.5} parent=15 // pred_fallthru
        _
      // Predicated region
      $region21: #{_lambda_.5} parent=15 // pred_check
        %p113 = pneg %p54
      $region22: #{_lambda_.5} parent=15 // pred_check_branch
        %115 = sbr.rel (%p113) target = $region24
      $region23: #{_lambda_.5} parent=15 // pred_region
        %p116 = scmp.lt.s32.totalorder %s8, 1
        %s117 = scalar_select %p116, %s8, 1
        %s118 = smul.addr %s117, 2
        %s119 = smul.addr %s118, 8
        %s120 = scalar_lea.vmem %s1, %s119
      $region24: #{_lambda_.5} parent=15 // pred_fallthru
        _
    $region16: #{_lambda_.5} parent=5 // pred_fallthru
      _
    %p121 = scmp.le.s32.totalorder 1, %s8
    %p122 = scmp.lt.s32.totalorder %s8, 3
    %p123 = pnand %p121, %p122
    %p124 = pneg %p123
    // Predicated region
    $region25: #{_lambda_.5} parent=5 // pred_check
      _
    $region26: #{_lambda_.5} parent=5 // pred_check_branch
      %126 = sbr.rel (%p123) target = $region28
    $region27: #{_lambda_.5} parent=5 // pred_region
      %s127 = ssub.s32 %s8, 1
      %p128 = scmp.lt.s32.totalorder %s13, 1
      %s129 = scalar_select %p128, %s13, 1
      %s130 = smul.addr %s129, 4
      %s131 = smul.addr %s130, 8
      %s132 = scalar_lea.vmem %s0, %s131
      %p133 = pneg %p34
      %p134 = pneg %p31
      %p135 = scmp.lt.s32.totalorder %s13, 1
      %s136 = scalar_select %p135, %s13, 1
      %s137 = smul.addr %s136, 2
      %s138 = smul.addr %s137, 8
      %s139 = scalar_lea.vmem %s1, %s138
      %p140 = pneg %p60
      %p141 = pneg %p57
      %p142 = pneg %p86
      %p143 = pneg %p83
      %p144 = scmp.lt.s32.totalorder %s13, 1
      %s145 = scalar_select %p144, %s13, 1
      %s146 = smul.addr %s145, 4
      %s147 = smul.addr %s146, 8
      %s148 = scalar_lea.vmem %s2, %s147
      %p149 = scmp.lt.s32.totalorder %s13, 1
      %s150 = scalar_select %p149, %s13, 1
      %s151 = smul.addr %s150, 4
      %s152 = smul.addr %s151, 8
      %s153 = scalar_lea.vmem %s0, %s152
      %p154 = scmp.lt.s32.totalorder %s13, 1
      %s155 = scalar_select %p154, %s13, 1
      %s156 = smul.addr %s155, 2
      %s157 = smul.addr %s156, 8
      %s158 = scalar_lea.vmem %s1, %s157
      %p159 = scmp.lt.s32.totalorder %s13, 1
      %s160 = scalar_select %p159, %s13, 1
      %s161 = smul.addr %s160, 4
      %s162 = smul.addr %s161, 8
      %s163 = scalar_lea.vmem %s2, %s162
      %v164 = vld [vmem:[%s158] sm:$0xff]
      %v165 = vld [vmem:[%s158 + $0x8] sm:$0xff]
      %v166 = vld [vmem:[%s153] sm:$0xff]
      %v167 = vld [vmem:[%s153 + $0x8] sm:$0xff]
      %v168 = vld [vmem:[%s153 + $0x10] sm:$0xff]
      %v169 = vld [vmem:[%s153 + $0x18] sm:$0xff]
      %171 = vset.pattern.permute.xlu0 0
      %172 = vperm.xlu0 %171, %v164
      %v173 = vpop.permute.xlu0 %172
      %176 = vset.pattern.permute.xlu0 0
      %177 = vperm.xlu0 %176, %v165
      %v178 = vpop.permute.xlu0 %177
      %v180 = vmul.f32 %v166, %v173
      %v181 = vmul.f32 %v167, %v173
      %v182 = vmul.f32 %v168, %v178
      %v183 = vmul.f32 %v169, %v178
      %184 = vset.pattern.permute.xlu0 1
      %185 = vperm.xlu0 %184, %v164
      %v186 = vpop.permute.xlu0 %185
      %188 = vset.pattern.permute.xlu0 1
      %189 = vperm.xlu0 %188, %v165
      %v190 = vpop.permute.xlu0 %189
      %v192 = vadd.f32 %v180, %v186
      %v193 = vadd.f32 %v181, %v186
      %v194 = vadd.f32 %v182, %v190
      %v195 = vadd.f32 %v183, %v190
      %v196 = vmul.f32 %v192, 0.5
      %v197 = vmul.f32 %v193, 0.5
      %v198 = vmul.f32 %v194, 0.5
      %v199 = vmul.f32 %v195, 0.5
      %v200 = vmul.f32 %v192, 0.70710677
      %v201 = vmul.f32 %v193, 0.70710677
      %v202 = vmul.f32 %v194, 0.70710677
      %v203 = vmul.f32 %v195, 0.70710677
      %v204 = verf.f32.pop %v200
      %v205 = verf.f32.pop %v201
      %v206 = verf.f32.pop %v202
      %v207 = verf.f32.pop %v203
      %v208 = vadd.f32 %v204, 1.0
      %v209 = vadd.f32 %v205, 1.0
      %v210 = vadd.f32 %v206, 1.0
      %v211 = vadd.f32 %v207, 1.0
      %v212 = vmul.f32 %v196, %v208
      %v213 = vmul.f32 %v197, %v209
      %v214 = vmul.f32 %v198, %v210
      %v215 = vmul.f32 %v199, %v211
      %216 = vst [vmem:[%s163] sm:$0xff] %v212
      %217 = vst [vmem:[%s163 + $0x8] sm:$0xff] %v213
      %218 = vst [vmem:[%s163 + $0x10] sm:$0xff] %v214
      %219 = vst [vmem:[%s163 + $0x18] sm:$0xff] %v215
      %p220 = scmp.lt.s32.totalorder %s13, 1
      %s221 = scalar_select %p220, %s13, 1
      %s222 = smul.addr %s221, 4
      %s223 = smul.addr %s222, 8
      %s224 = scalar_lea.vmem %s2, %s223
      // Predicated region
      $region29: #{_lambda_.5} parent=27 // pred_check
        %p225 = pneg %p83
      $region30: #{_lambda_.5} parent=27 // pred_check_branch
        %227 = sbr.rel (%p225) target = $region32
      $region31: #{_lambda_.5} parent=27 // pred_region
        _
      $region32: #{_lambda_.5} parent=27 // pred_fallthru
        _
    $region28: #{_lambda_.5} parent=5 // pred_fallthru
      _
    %p228 = scmp.le.s32.totalorder 2, %s8
    // Predicated region
    $region33: #{_lambda_.5} parent=5 // pred_check
      %p229 = pneg %p228
    $region34: #{_lambda_.5} parent=5 // pred_check_branch
      %231 = sbr.rel (%p229) target = $region36
    $region35: #{_lambda_.5} parent=5 // pred_region
      %s232 = ssub.s32 %s8, 2
      // Predicated region
      $region37: #{_lambda_.5} parent=35 // pred_check
        %p233 = pneg %p89
      $region38: #{_lambda_.5} parent=35 // pred_check_branch
        %235 = sbr.rel (%p233) target = $region40
      $region39: #{_lambda_.5} parent=35 // pred_region
        %p236 = scmp.lt.s32.totalorder %s14, 1
        %s237 = scalar_select %p236, %s14, 1
        %s238 = smul.addr %s237, 4
        %s239 = smul.addr %s238, 8
        %s240 = scalar_lea.vmem %s2, %s239
      $region40: #{_lambda_.5} parent=35 // pred_fallthru
        _
    $region36: #{_lambda_.5} parent=5 // pred_fallthru
      _
  $region6: #{_lambda_.5} parent=0 // loop_footer
    %s12 = sadd.s32 1, %s8
  $region7: #{_lambda_.5} parent=0 // loop_footer_branch
    %7 = sbr.rel target = $region3
  $region8: #{_lambda_.5} parent=0 // loop_exit
    _

// kernel: _lambda_.3
$region0: #{_lambda_.3}
  #allocation0 [shape = 'u32[]', space=smem, size = 0x4, offset = 0x4, fixed_abs, tag = 'smem constant byte address 0x4 - core index']
  #allocation1 [shape = 'u32[144,128]{1,0:T(1,128)}', space=vmem, size = 0x12000, scoped, tag = 'internal scratch']
  #allocation2 [shape = 'f32[8,384]{1,0:T(8,128)}', space=vmem, size = 0x3000, scoped, tag = 'scratch operand']
  #allocation3 [shape = 'f32[72,256]{1,0:T(8,128)}', space=vmem, size = 0x12000, scoped, tag = 'scratch operand']
  %s0 = inlined_call_operand.vmem [shape: f32[2,4,256], index: 0, kind: input, shape index: {}]
  %s1 = inlined_call_operand.vmem [shape: f32[8,72], index: 1, kind: input, shape index: {}]
  %s2 = inlined_call_operand.vmem [shape: f32[1,256], index: 2, kind: input, shape index: {}]
  %s3 = inlined_call_operand.vmem [shape: f32[2,8,256], index: 3, kind: output, shape index: {0}]
  %s4 = inlined_call_operand.vmem [shape: f32[2,8,128], index: 4, kind: output, shape index: {1}]
  %5 = xla_tuple %s3, %s4
  %s6 = sld [smem:[#allocation0]]
  $region53: #{_lambda_.3} parent=0
    _
  %s8 = ssub.s32 1, %s6
  %s9 = scalar_select 0, %s8, %s6
  loop: start=0, step=1, limit=4
  $region2: #{_lambda_.3} parent=0 // loop_pre_header
    _
  $region3: #{_lambda_.3} parent=0 // loop_header
    %s11 = sphi 0, %s15
    %p12 = scmp.ge.s32.totalorder %s11, 4
    %s21 = sphi 0, %s23
    %s24 = sphi 0, %s21
    %s25 = sphi 0, %s24
    %s41 = sphi 0, %s25
    %s45 = sphi 0, %s45
    %s47 = sphi 0, %s45
    %s48 = sphi 0, %s47
    %s62 = sphi 0, %s48
    %s66 = sphi 0, %s66
    %s68 = sphi 0, %s66
    %s69 = sphi 0, %s68
    %s83 = sphi 0, %s69
    %s89 = sphi 0, %s91
    %s92 = sphi 0, %s89
    %s93 = sphi 0, %s92
    %s109 = sphi 0, %s93
    %s115 = sphi 0, %s117
    %s118 = sphi 0, %s115
    %s119 = sphi 0, %s118
    %s135 = sphi 0, %s119
  $region4: #{_lambda_.3} parent=0 // loop_header_branch
    %14 = sbr.rel (%p12) target = $region8
  $region5: #{_lambda_.3} parent=0 // loop_body
    %s16 = ssub.s32 %s11, 1
    %s17 = ssub.s32 %s11, 2
    %s18 = sadd.s32 %s11, 1
    %s19 = ssub.s32 %s11, %s18
    %p20 = scmp.eq.s32.totalorder %s19, 0
    %s22 = sadd.s32 %s21, 1
    %s23 = scalar_select %p20, %s21, %s22
    %p26 = pneg %p20
    %p27 = scmp.eq.s32.totalorder %s11, 1
    %p28 = por %p26, %p27
    %p29 = scmp.ne.s32.totalorder %s21, %s24
    %p30 = scmp.eq.s32.totalorder %s11, 0
    %p31 = por %p29, %p30
    %p32 = scmp.ne.s32.totalorder %s21, %s24
    %p33 = scmp.eq.s32.totalorder %s16, 1
    %p34 = por %p32, %p33
    %p35 = scmp.ne.s32.totalorder %s24, %s25
    %p36 = scmp.eq.s32.totalorder %s16, 0
    %p37 = por %p35, %p36
    %p38 = scmp.ne.s32.totalorder %s24, %s25
    %p39 = scmp.eq.s32.totalorder %s17, 1
    %p40 = por %p38, %p39
    %p42 = scmp.ne.s32.totalorder %s25, %s41
    %p43 = scmp.eq.s32.totalorder %s17, 0
    %p44 = por %p42, %p43
    %s46 = sadd.s32 %s45, 1
    %p49 = scmp.eq.s32.totalorder %s11, 1
    %p50 = scmp.ne.s32.totalorder %s45, %s47
    %p51 = scmp.eq.s32.totalorder %s11, 0
    %p52 = por %p50, %p51
    %p53 = scmp.ne.s32.totalorder %s45, %s47
    %p54 = scmp.eq.s32.totalorder %s16, 1
    %p55 = por %p53, %p54
    %p56 = scmp.ne.s32.totalorder %s47, %s48
    %p57 = scmp.eq.s32.totalorder %s16, 0
    %p58 = por %p56, %p57
    %p59 = scmp.ne.s32.totalorder %s47, %s48
    %p60 = scmp.eq.s32.totalorder %s17, 1
    %p61 = por %p59, %p60
    %p63 = scmp.ne.s32.totalorder %s48, %s62
    %p64 = scmp.eq.s32.totalorder %s17, 0
    %p65 = por %p63, %p64
    %s67 = sadd.s32 %s66, 1
    %p70 = scmp.eq.s32.totalorder %s11, 1
    %p71 = scmp.ne.s32.totalorder %s66, %s68
    %p72 = scmp.eq.s32.totalorder %s11, 0
    %p73 = por %p71, %p72
    %p74 = scmp.ne.s32.totalorder %s66, %s68
    %p75 = scmp.eq.s32.totalorder %s16, 1
    %p76 = por %p74, %p75
    %p77 = scmp.ne.s32.totalorder %s68, %s69
    %p78 = scmp.eq.s32.totalorder %s16, 0
    %p79 = por %p77, %p78
    %p80 = scmp.ne.s32.totalorder %s68, %s69
    %p81 = scmp.eq.s32.totalorder %s17, 1
    %p82 = por %p80, %p81
    %p84 = scmp.ne.s32.totalorder %s69, %s83
    %p85 = scmp.eq.s32.totalorder %s17, 0
    %p86 = por %p84, %p85
    %s87 = ssub.s32 %s11, %s18
    %p88 = scmp.eq.s32.totalorder %s87, 0
    %s90 = sadd.s32 %s89, 1
    %s91 = scalar_select %p88, %s89, %s90
    %p94 = pneg %p88
    %p95 = scmp.eq.s32.totalorder %s11, 1
    %p96 = por %p94, %p95
    %p97 = scmp.ne.s32.totalorder %s89, %s92
    %p98 = scmp.eq.s32.totalorder %s11, 0
    %p99 = por %p97, %p98
    %p100 = scmp.ne.s32.totalorder %s89, %s92
    %p101 = scmp.eq.s32.totalorder %s16, 1
    %p102 = por %p100, %p101
    %p103 = scmp.ne.s32.totalorder %s92, %s93
    %p104 = scmp.eq.s32.totalorder %s16, 0
    %p105 = por %p103, %p104
    %p106 = scmp.ne.s32.totalorder %s92, %s93
    %p107 = scmp.eq.s32.totalorder %s17, 1
    %p108 = por %p106, %p107
    %p110 = scmp.ne.s32.totalorder %s93, %s109
    %p111 = scmp.eq.s32.totalorder %s17, 0
    %p112 = por %p110, %p111
    %s113 = ssub.s32 %s11, %s18
    %p114 = scmp.eq.s32.totalorder %s113, 0
    %s116 = sadd.s32 %s115, 1
    %s117 = scalar_select %p114, %s115, %s116
    %p120 = pneg %p114
    %p121 = scmp.eq.s32.totalorder %s11, 1
    %p122 = por %p120, %p121
    %p123 = scmp.ne.s32.totalorder %s115, %s118
    %p124 = scmp.eq.s32.totalorder %s11, 0
    %p125 = por %p123, %p124
    %p126 = scmp.ne.s32.totalorder %s115, %s118
    %p127 = scmp.eq.s32.totalorder %s16, 1
    %p128 = por %p126, %p127
    %p129 = scmp.ne.s32.totalorder %s118, %s119
    %p130 = scmp.eq.s32.totalorder %s16, 0
    %p131 = por %p129, %p130
    %p132 = scmp.ne.s32.totalorder %s118, %s119
    %p133 = scmp.eq.s32.totalorder %s17, 1
    %p134 = por %p132, %p133
    %p136 = scmp.ne.s32.totalorder %s119, %s135
    %p137 = scmp.eq.s32.totalorder %s17, 0
    %p138 = por %p136, %p137
    %p139 = scmp.le.s32.totalorder 1, %s11
    %p140 = scmp.lt.s32.totalorder %s11, 3
    %p141 = pnand %p139, %p140
    %p142 = pneg %p141
    // Predicated region
    $region9: #{_lambda_.3} parent=5 // pred_check
      _
    $region10: #{_lambda_.3} parent=5 // pred_check_branch
      %144 = sbr.rel (%p141) target = $region12
    $region11: #{_lambda_.3} parent=5 // pred_region
      %s145 = ssub.s32 %s11, 1
      // Predicated region
      $region13: #{_lambda_.3} parent=11 // pred_check
        %p146 = pneg %p58
      $region14: #{_lambda_.3} parent=11 // pred_check_branch
        %148 = sbr.rel (%p146) target = $region16
      $region15: #{_lambda_.3} parent=11 // pred_region
        _
      $region16: #{_lambda_.3} parent=11 // pred_fallthru
        _
      // Predicated region
      $region17: #{_lambda_.3} parent=11 // pred_check
        %p149 = pneg %p79
      $region18: #{_lambda_.3} parent=11 // pred_check_branch
        %151 = sbr.rel (%p149) target = $region20
      $region19: #{_lambda_.3} parent=11 // pred_region
        _
      $region20: #{_lambda_.3} parent=11 // pred_fallthru
        _
    $region12: #{_lambda_.3} parent=5 // pred_fallthru
      _
    %p152 = scmp.lt.s32.totalorder %s11, 2
    // Predicated region
    $region21: #{_lambda_.3} parent=5 // pred_check
      %p153 = pneg %p152
    $region22: #{_lambda_.3} parent=5 // pred_check_branch
      %155 = sbr.rel (%p153) target = $region24
    $region23: #{_lambda_.3} parent=5 // pred_region
      // Predicated region
      $region25: #{_lambda_.3} parent=23 // pred_check
        %p156 = pneg %p31
      $region26: #{_lambda_.3} parent=23 // pred_check_branch
        %158 = sbr.rel (%p156) target = $region28
      $region27: #{_lambda_.3} parent=23 // pred_region
        %p159 = scmp.lt.s32.totalorder %s11, 1
        %s160 = scalar_select %p159, %s11, 1
        %s161 = smul.addr %s160, 2
        %s162 = smul.addr %s161, 4
        %s163 = scalar_lea.vmem %s0, %s162
      $region28: #{_lambda_.3} parent=23 // pred_fallthru
        _
    $region24: #{_lambda_.3} parent=5 // pred_fallthru
      _
    %p164 = scmp.le.s32.totalorder 1, %s11
    %p165 = scmp.lt.s32.totalorder %s11, 3
    %p166 = pnand %p164, %p165
    %p167 = pneg %p166
    // Predicated region
    $region29: #{_lambda_.3} parent=5 // pred_check
      _
    $region30: #{_lambda_.3} parent=5 // pred_check_branch
      %169 = sbr.rel (%p166) target = $region32
    $region31: #{_lambda_.3} parent=5 // pred_region
      %s170 = ssub.s32 %s11, 1
      %p171 = scmp.lt.s32.totalorder %s16, 1
      %s172 = scalar_select %p171, %s16, 1
      %s173 = smul.addr %s172, 2
      %s174 = smul.addr %s173, 4
      %s175 = scalar_lea.vmem %s0, %s174
      %p176 = pneg %p37
      %p177 = pneg %p34
      %p178 = pneg %p58
      %p179 = pneg %p55
      %p180 = pneg %p79
      %p181 = pneg %p76
      %p182 = pneg %p105
      %p183 = pneg %p102
      %p184 = scmp.lt.s32.totalorder %s16, 1
      %s185 = scalar_select %p184, %s16, 1
      %s186 = smul.addr %s185, 2
      %s187 = smul.addr %s186, 8
      %s188 = scalar_lea.vmem %s3, %s187
      %p189 = pneg %p131
      %p190 = pneg %p128
      %p191 = scmp.lt.s32.totalorder %s16, 1
      %s192 = scalar_select %p191, %s16, 1
      %s193 = smul.addr %s192, 8
      %s194 = scalar_lea.vmem %s4, %s193
      %p195 = scmp.lt.s32.totalorder %s16, 1
      %s196 = scalar_select %p195, %s16, 1
      %s197 = smul.addr %s196, 2
      %s198 = smul.addr %s197, 4
      %s199 = scalar_lea.vmem %s0, %s198
      %p200 = scmp.lt.s32.totalorder %s16, 1
      %s201 = scalar_select %p200, %s16, 1
      %s202 = smul.addr %s201, 2
      %s203 = smul.addr %s202, 8
      %s204 = scalar_lea.vmem %s3, %s203
      %p205 = scmp.lt.s32.totalorder %s16, 1
      %s206 = scalar_select %p205, %s16, 1
      %s207 = smul.addr %s206, 8
      %s208 = scalar_lea.vmem %s4, %s207
      %209 = vst [vmem:[#allocation2] sm:$0xff] 0.0
      %210 = vst [vmem:[#allocation2 + $0x8] sm:$0xff] 0.0
      %211 = vst [vmem:[#allocation2 + $0x10] sm:$0xff] 0.0
      %v212 = vld [vmem:[%s2] sm:$0x3]
      %v213 = vlaneseq
      %v214 = vand.u32 %v213, 127
      %vm215 = vcmp.eq.s32.totalorder %v214, 0
      %v216 = vsel %vm215, 1, 0
      %v217 = vcvt.s32.f32 %v216
      %vm218 = vcmp.eq.s32.totalorder %v214, 1
      %v219 = vsel %vm218, 1, 0
      %v220 = vcvt.s32.f32 %v219
      %v221 = vld [vmem:[%s1] sm:$0xff]
      %v222 = vld [vmem:[%s199] sm:$0xff]
      %v224 = vcombine.high %v222, %v222
      %226 = vst [vmem:[#allocation2] sm:$0xf] %v222
      %227 = vst [vmem:[#allocation2 + $0x8] sm:$0xf] %v224
      %v228 = vld [vmem:[#allocation2] sm:$0xff]
      %v229 = vld [vmem:[#allocation2 + $0x8] sm:$0xff]
      %230 = vst [vmem:[#allocation3] sm:$0xff] %v228
      %231 = vst [vmem:[#allocation3 + $0x8] sm:$0xff] %v229
      %v232 = vld [vmem:[#allocation2] sm:$0xff]
      %v233 = vld [vmem:[#allocation2 + $0x8] sm:$0xff]
      %v234 = vld [vmem:[#allocation2 + $0x10] sm:$0xff]
      %238 = vrot.lane.b32.xlu0 %v232, 127
      %v239 = vpop.permute.xlu0 %238
      %240 = vrot.lane.b32.xlu0 %v233, 127
      %v241 = vpop.permute.xlu0 %240
      %242 = vrot.lane.b32.xlu0 %v234, 127
      %v243 = vpop.permute.xlu0 %242
      %vm244 = vcmask 1039360
      %v245 = vsel %vm244, %v239, %v241
      %v246 = vsel %vm244, %v241, %v243
      %249 = vst [vmem:[#allocation3 + $0x10] sm:$0xff] %v245
      %250 = vst [vmem:[#allocation3 + $0x18] sm:$0xff] %v246
      %v251 = vld [vmem:[#allocation2] sm:$0xff]
      %v252 = vld [vmem:[#allocation2 + $0x8] sm:$0xff]
      %v253 = vld [vmem:[#allocation2 + $0x10] sm:$0xff]
      %257 = vrot.lane.b32.xlu0 %v251, 126
      %v258 = vpop.permute.xlu0 %257
      %259 = vrot.lane.b32.xlu0 %v252, 126
      %v260 = vpop.permute.xlu0 %259
      %261 = vrot.lane.b32.xlu0 %v253, 126
      %v262 = vpop.permute.xlu0 %261
      %vm263 = vcmask 1031168
      %v264 = vsel %vm263, %v258, %v260
      %v265 = vsel %vm263, %v260, %v262
      %268 = vst [vmem:[#allocation3 + $0x20] sm:$0xff] %v264
      %269 = vst [vmem:[#allocation3 + $0x28] sm:$0xff] %v265
      %v270 = vld [vmem:[#allocation2] sm:$0xff]
      %v271 = vld [vmem:[#allocation2 + $0x8] sm:$0xff]
      %v272 = vld [vmem:[#allocation2 + $0x10] sm:$0xff]
      %276 = vrot.lane.b32.xlu0 %v270, 112
      %v277 = vpop.permute.xlu0 %276
      %278 = vrot.lane.b32.xlu0 %v271, 112
      %v279 = vpop.permute.xlu0 %278
      %280 = vrot.lane.b32.xlu0 %v272, 112
      %v281 = vpop.permute.xlu0 %280
      %vm282 = vcmask 916480
      %v283 = vsel %vm282, %v277, %v279
      %v284 = vsel %vm282, %v279, %v281
      %287 = vst [vmem:[#allocation3 + $0x30] sm:$0xff] %v283
      %288 = vst [vmem:[#allocation3 + $0x38] sm:$0xff] %v284
      %v289 = vld [vmem:[#allocation2] sm:$0xff]
      %v290 = vld [vmem:[#allocation2 + $0x8] sm:$0xff]
      %v291 = vld [vmem:[#allocation2 + $0x10] sm:$0xff]
      %295 = vrot.lane.b32.xlu0 %v289, 111
      %v296 = vpop.permute.xlu0 %295
      %297 = vrot.lane.b32.xlu0 %v290, 111
      %v298 = vpop.permute.xlu0 %297
      %299 = vrot.lane.b32.xlu0 %v291, 111
      %v300 = vpop.permute.xlu0 %299
      %vm301 = vcmask 908288
      %v302 = vsel %vm301, %v296, %v298
      %v303 = vsel %vm301, %v298, %v300
      %306 = vst [vmem:[#allocation3 + $0x40] sm:$0xff] %v302
      %307 = vst [vmem:[#allocation3 + $0x48] sm:$0xff] %v303
      %v308 = vld [vmem:[#allocation2] sm:$0xff]
      %v309 = vld [vmem:[#allocation2 + $0x8] sm:$0xff]
      %v310 = vld [vmem:[#allocation2 + $0x10] sm:$0xff]
      %314 = vrot.lane.b32.xlu0 %v308, 110
      %v315 = vpop.permute.xlu0 %314
      %316 = vrot.lane.b32.xlu0 %v309, 110
      %v317 = vpop.permute.xlu0 %316
      %318 = vrot.lane.b32.xlu0 %v310, 110
      %v319 = vpop.permute.xlu0 %318
      %vm320 = vcmask 900096
      %v321 = vsel %vm320, %v315, %v317
      %v322 = vsel %vm320, %v317, %v319
      %325 = vst [vmem:[#allocation3 + $0x50] sm:$0xff] %v321
      %326 = vst [vmem:[#allocation3 + $0x58] sm:$0xff] %v322
      %v327 = vld [vmem:[#allocation2] sm:$0xff]
      %v328 = vld [vmem:[#allocation2 + $0x8] sm:$0xff]
      %v329 = vld [vmem:[#allocation2 + $0x10] sm:$0xff]
      %333 = vrot.lane.b32.xlu0 %v327, 96
      %v334 = vpop.permute.xlu0 %333
      %335 = vrot.lane.b32.xlu0 %v328, 96
      %v336 = vpop.permute.xlu0 %335
      %337 = vrot.lane.b32.xlu0 %v329, 96
      %v338 = vpop.permute.xlu0 %337
      %vm339 = vcmask 785408
      %v340 = vsel %vm339, %v334, %v336
      %v341 = vsel %vm339, %v336, %v338
      %344 = vst [vmem:[#allocation3 + $0x60] sm:$0xff] %v340
      %345 = vst [vmem:[#allocation3 + $0x68] sm:$0xff] %v341
      %v346 = vld [vmem:[#allocation2] sm:$0xff]
      %v347 = vld [vmem:[#allocation2 + $0x8] sm:$0xff]
      %v348 = vld [vmem:[#allocation2 + $0x10] sm:$0xff]
      %352 = vrot.lane.b32.xlu0 %v346, 95
      %v353 = vpop.permute.xlu0 %352
      %354 = vrot.lane.b32.xlu0 %v347, 95
      %v355 = vpop.permute.xlu0 %354
      %356 = vrot.lane.b32.xlu0 %v348, 95
      %v357 = vpop.permute.xlu0 %356
      %vm358 = vcmask 777216
      %v359 = vsel %vm358, %v353, %v355
      %v360 = vsel %vm358, %v355, %v357
      %363 = vst [vmem:[#allocation3 + $0x70] sm:$0xff] %v359
      %364 = vst [vmem:[#allocation3 + $0x78] sm:$0xff] %v360
      %v365 = vld [vmem:[#allocation2] sm:$0xff]
      %v366 = vld [vmem:[#allocation2 + $0x8] sm:$0xff]
      %v367 = vld [vmem:[#allocation2 + $0x10] sm:$0xff]
      %371 = vrot.lane.b32.xlu0 %v365, 94
      %v372 = vpop.permute.xlu0 %371
      %373 = vrot.lane.b32.xlu0 %v366, 94
      %v374 = vpop.permute.xlu0 %373
      %375 = vrot.lane.b32.xlu0 %v367, 94
      %v376 = vpop.permute.xlu0 %375
      %vm377 = vcmask 769024
      %v378 = vsel %vm377, %v372, %v374
      %v379 = vsel %vm377, %v374, %v376
      %382 = vst [vmem:[#allocation3 + $0x80] sm:$0xff] %v378
      %383 = vst [vmem:[#allocation3 + $0x88] sm:$0xff] %v379
      %v384 = vld [vmem:[#allocation3] sm:$0xff]
      %v385 = vld [vmem:[#allocation3 + $0x8] sm:$0xff]
      %v386 = vld [vmem:[#allocation3 + $0x10] sm:$0xff]
      %v387 = vld [vmem:[#allocation3 + $0x18] sm:$0xff]
      %v388 = vld [vmem:[#allocation3 + $0x20] sm:$0xff]
      %v389 = vld [vmem:[#allocation3 + $0x28] sm:$0xff]
      %v390 = vld [vmem:[#allocation3 + $0x30] sm:$0xff]
      %v391 = vld [vmem:[#allocation3 + $0x38] sm:$0xff]
      %v392 = vld [vmem:[#allocation3 + $0x40] sm:$0xff]
      %v393 = vld [vmem:[#allocation3 + $0x48] sm:$0xff]
      %v394 = vld [vmem:[#allocation3 + $0x50] sm:$0xff]
      %v395 = vld [vmem:[#allocation3 + $0x58] sm:$0xff]
      %v396 = vld [vmem:[#allocation3 + $0x60] sm:$0xff]
      %v397 = vld [vmem:[#allocation3 + $0x68] sm:$0xff]
      %v398 = vld [vmem:[#allocation3 + $0x70] sm:$0xff]
      %v399 = vld [vmem:[#allocation3 + $0x78] sm:$0xff]
      %v400 = vld [vmem:[#allocation3 + $0x80] sm:$0xff]
      %v401 = vld [vmem:[#allocation3 + $0x88] sm:$0xff]
      %vm402 = vcmask 588800
      %v404 = vsel %vm402, %v221, 0
      %406 = vmatprep.subr.mxu0 %v385
      %407 = vmatpush1.msra.mxu0 %v384
      %408 = vmatprep.subr.mxu0 %v387
      %409 = vmatpush1.msra.mxu0 %v386
      %410 = vmatprep.subr.mxu0 %v389
      %411 = vmatpush1.msra.mxu0 %v388
      %412 = vmatprep.subr.mxu0 %v391
      %413 = vmatpush1.msra.mxu0 %v390
      %414 = vmatprep.subr.mxu0 %v393
      %415 = vmatpush1.msra.mxu0 %v392
      %416 = vmatprep.subr.mxu0 %v395
      %417 = vmatpush1.msra.mxu0 %v394
      %418 = vmatprep.subr.mxu0 %v397
      %419 = vmatpush1.msra.mxu0 %v396
      %420 = vmatprep.subr.mxu0 %v399
      %421 = vmatpush1.msra.mxu0 %v398
      %422 = vmatprep.subr.mxu0 %v401
      %423 = vmatpush1.msra.mxu0 %v400
      %424 = vmatprep.subr.mxu0 0.0
      %425 = vmatpush1.msra.mxu0 0.0
      %426 = vmatprep.subr.mxu0 0.0
      %427 = vmatpush1.msra.mxu0 0.0
      %428 = vmatprep.subr.mxu0 0.0
      %429 = vmatpush1.msra.mxu0 0.0
      %430 = vmatprep.subr.mxu0 0.0
      %431 = vmatpush1.msra.mxu0 0.0
      %432 = vmatprep.subr.mxu0 0.0
      %433 = vmatpush1.msra.mxu0 0.0
      %434 = vmatprep.subr.mxu0 0.0
      %435 = vmatpush1.msra.mxu0 0.0
      %436 = vmatprep.subr.mxu0 0.0
      %437 = vmatpush1.msra.mxu0 0.0
      %438 = vmatprep.subr.mxu0 0.0
      %439 = vmatpush1.msra.mxu0 0.0
      %440 = vmatprep.subr.mxu0 0.0
      %441 = vmatpush1.msra.mxu0 0.0
      %442 = vmatprep.subr.mxu0 0.0
      %443 = vmatpush1.msra.mxu0 0.0
      %444 = vmatprep.subr.mxu0 0.0
      %445 = vmatpush1.msra.mxu0 0.0
      %446 = vmatprep.subr.mxu0 0.0
      %447 = vmatpush1.msra.mxu0 0.0
      %448 = vmatprep.subr.mxu0 0.0
      %449 = vmatpush1.msra.mxu0 0.0
      %450 = vmatprep.subr.mxu0 0.0
      %451 = vmatpush1.msra.mxu0 0.0
      %452 = vmatprep.subr.mxu0 0.0
      %453 = vmatpush1.msra.mxu0 0.0
      %454 = vmatprep.subr.mxu0 0.0
      %455 = vmatpush1.msra.mxu0 0.0
      %456 = vmatprep.subr.mxu0 0.0
      %457 = vmatpush1.msra.mxu0 0.0
      %458 = vmatprep.subr.mxu0 0.0
      %459 = vmatpush1.msra.mxu0 0.0
      %460 = vmatprep.subr.mxu0 0.0
      %461 = vmatpush1.msra.mxu0 0.0
      %462 = vmatprep.subr.mxu0 0.0
      %463 = vmatpush1.msra.mxu0 0.0
      %464 = vmatprep.subr.mxu0 0.0
      %465 = vmatpush1.msra.mxu0 0.0
      %466 = vmatprep.subr.mxu0 0.0
      %467 = vmatpush1.msra.mxu0 0.0
      %468 = vmatprep.subr.mxu0 0.0
      %469 = vmatpush1.msra.mxu0 0.0
      %470 = vmatprep.mubr.f32.mxu0 0.0
      %471 = vmatmul.mubr.f32.gmra.mrb[0].mxu0 %v404
      %v472 = vpop.f32.mrb[0].mxu0
      %v473 = vadd.f32 0.0, %v472
      %v474 = vpop.f32.mrb[0].mxu0
      %v475 = vadd.f32 0.0, %v474
      %476 = vdwg.mxu0
      %477 = vst [vmem:[%s204] sm:$0xff] %v473
      %478 = vst [vmem:[%s204 + $0x8] sm:$0xff] %v475
      %v480 = vlaneseq
      %v481 = vshrl.u32 %v480, 7
      %v482 = vsub.s32 0, %v481
      %v483 = vrot.slane %v212, %v482
      %v484 = vlaneseq
      %v485 = vshrl.u32 %v484, 7
      %v486 = vsub.s32 1, %v485
      %v487 = vrot.slane %v212, %v486
      %v490 = vmul.f32 %v473, %v483
      %v491 = vmul.f32 %v475, %v487
      %v492 = vadd.f32 %v490, %v491
      %493 = vadd.xlane.f32.xlu0 %v492
      %v494 = vpop.xlane.xlu0 %493
      %v495 = vmul.f32 %v490, %v473
      %v496 = vmul.f32 %v491, %v475
      %v497 = vadd.f32 %v495, %v496
      %498 = vadd.xlane.f32.xlu0 %v497
      %v499 = vpop.xlane.xlu0 %498
      %v500 = vmul.f32 %v494, %v217
      %v501 = vmul.f32 %v499, %v220
      %v502 = vadd.f32 %v500, %v501
      %503 = vst [vmem:[%s208] sm:$0xff] %v502
      %p504 = scmp.lt.s32.totalorder %s16, 1
      %s505 = scalar_select %p504, %s16, 1
      %s506 = smul.addr %s505, 2
      %s507 = smul.addr %s506, 8
      %s508 = scalar_lea.vmem %s3, %s507
      %p509 = scmp.lt.s32.totalorder %s16, 1
      %s510 = scalar_select %p509, %s16, 1
      %s511 = smul.addr %s510, 8
      %s512 = scalar_lea.vmem %s4, %s511
      // Predicated region
      $region33: #{_lambda_.3} parent=31 // pred_check
        %p513 = pneg %p102
      $region34: #{_lambda_.3} parent=31 // pred_check_branch
        %515 = sbr.rel (%p513) target = $region36
      $region35: #{_lambda_.3} parent=31 // pred_region
        _
      $region36: #{_lambda_.3} parent=31 // pred_fallthru
        _
      // Predicated region
      $region37: #{_lambda_.3} parent=31 // pred_check
        %p516 = pneg %p128
      $region38: #{_lambda_.3} parent=31 // pred_check_branch
        %518 = sbr.rel (%p516) target = $region40
      $region39: #{_lambda_.3} parent=31 // pred_region
        _
      $region40: #{_lambda_.3} parent=31 // pred_fallthru
        _
    $region32: #{_lambda_.3} parent=5 // pred_fallthru
      _
    %p519 = scmp.le.s32.totalorder 2, %s11
    // Predicated region
    $region41: #{_lambda_.3} parent=5 // pred_check
      %p520 = pneg %p519
    $region42: #{_lambda_.3} parent=5 // pred_check_branch
      %522 = sbr.rel (%p520) target = $region44
    $region43: #{_lambda_.3} parent=5 // pred_region
      %s523 = ssub.s32 %s11, 2
      // Predicated region
      $region45: #{_lambda_.3} parent=43 // pred_check
        %p524 = pneg %p108
      $region46: #{_lambda_.3} parent=43 // pred_check_branch
        %526 = sbr.rel (%p524) target = $region48
      $region47: #{_lambda_.3} parent=43 // pred_region
        %p527 = scmp.lt.s32.totalorder %s17, 1
        %s528 = scalar_select %p527, %s17, 1
        %s529 = smul.addr %s528, 2
        %s530 = smul.addr %s529, 8
        %s531 = scalar_lea.vmem %s3, %s530
      $region48: #{_lambda_.3} parent=43 // pred_fallthru
        _
      // Predicated region
      $region49: #{_lambda_.3} parent=43 // pred_check
        %p532 = pneg %p134
      $region50: #{_lambda_.3} parent=43 // pred_check_branch
        %534 = sbr.rel (%p532) target = $region52
      $region51: #{_lambda_.3} parent=43 // pred_region
        %p535 = scmp.lt.s32.totalorder %s17, 1
        %s536 = scalar_select %p535, %s17, 1
        %s537 = smul.addr %s536, 8
        %s538 = scalar_lea.vmem %s4, %s537
      $region52: #{_lambda_.3} parent=43 // pred_fallthru
        _
    $region44: #{_lambda_.3} parent=5 // pred_fallthru
      _
  $region6: #{_lambda_.3} parent=0 // loop_footer
    %s15 = sadd.s32 1, %s11
  $region7: #{_lambda_.3} parent=0 // loop_footer_branch
    %10 = sbr.rel target = $region3
  $region8: #{_lambda_.3} parent=0 // loop_exit
    _

// kernel: _lambda_.4
$region0: #{_lambda_.4}
  #allocation0 [shape = 'u32[]', space=smem, size = 0x4, offset = 0x4, fixed_abs, tag = 'smem constant byte address 0x4 - core index']
  #allocation1 [shape = 'u32[144,128]{1,0:T(1,128)}', space=vmem, size = 0x12000, scoped, tag = 'internal scratch']
  #allocation2 [shape = 'f32[8,384]{1,0:T(8,128)}', space=vmem, size = 0x3000, scoped, tag = 'scratch operand']
  #allocation3 [shape = 'f32[72,256]{1,0:T(8,128)}', space=vmem, size = 0x12000, scoped, tag = 'scratch operand']
  %s0 = inlined_call_operand.vmem [shape: f32[2,8,256], index: 0, kind: input, shape index: {}]
  %s1 = inlined_call_operand.vmem [shape: f32[2,8,2], index: 1, kind: input, shape index: {}]
  %s2 = inlined_call_operand.vmem [shape: f32[16,72], index: 2, kind: input, shape index: {}]
  %s3 = inlined_call_operand.vmem [shape: f32[1,256], index: 3, kind: input, shape index: {}]
  %s4 = inlined_call_operand.vmem [shape: f32[2,16,256], index: 4, kind: output, shape index: {0}]
  %s5 = inlined_call_operand.vmem [shape: f32[2,16,128], index: 5, kind: output, shape index: {1}]
  %6 = xla_tuple %s4, %s5
  %s7 = sld [smem:[#allocation0]]
  $region57: #{_lambda_.4} parent=0
    _
  %s9 = ssub.s32 1, %s7
  %s10 = scalar_select 0, %s9, %s7
  loop: start=0, step=1, limit=4
  $region2: #{_lambda_.4} parent=0 // loop_pre_header
    _
  $region3: #{_lambda_.4} parent=0 // loop_header
    %s12 = sphi 0, %s16
    %p13 = scmp.ge.s32.totalorder %s12, 4
    %s22 = sphi 0, %s24
    %s25 = sphi 0, %s22
    %s26 = sphi 0, %s25
    %s42 = sphi 0, %s26
    %s48 = sphi 0, %s50
    %s51 = sphi 0, %s48
    %s52 = sphi 0, %s51
    %s68 = sphi 0, %s52
    %s72 = sphi 0, %s72
    %s74 = sphi 0, %s72
    %s75 = sphi 0, %s74
    %s89 = sphi 0, %s75
    %s93 = sphi 0, %s93
    %s95 = sphi 0, %s93
    %s96 = sphi 0, %s95
    %s110 = sphi 0, %s96
    %s116 = sphi 0, %s118
    %s119 = sphi 0, %s116
    %s120 = sphi 0, %s119
    %s136 = sphi 0, %s120
    %s142 = sphi 0, %s144
    %s145 = sphi 0, %s142
    %s146 = sphi 0, %s145
    %s162 = sphi 0, %s146
  $region4: #{_lambda_.4} parent=0 // loop_header_branch
    %15 = sbr.rel (%p13) target = $region8
  $region5: #{_lambda_.4} parent=0 // loop_body
    %s17 = ssub.s32 %s12, 1
    %s18 = ssub.s32 %s12, 2
    %s19 = sadd.s32 %s12, 1
    %s20 = ssub.s32 %s12, %s19
    %p21 = scmp.eq.s32.totalorder %s20, 0
    %s23 = sadd.s32 %s22, 1
    %s24 = scalar_select %p21, %s22, %s23
    %p27 = pneg %p21
    %p28 = scmp.eq.s32.totalorder %s12, 1
    %p29 = por %p27, %p28
    %p30 = scmp.ne.s32.totalorder %s22, %s25
    %p31 = scmp.eq.s32.totalorder %s12, 0
    %p32 = por %p30, %p31
    %p33 = scmp.ne.s32.totalorder %s22, %s25
    %p34 = scmp.eq.s32.totalorder %s17, 1
    %p35 = por %p33, %p34
    %p36 = scmp.ne.s32.totalorder %s25, %s26
    %p37 = scmp.eq.s32.totalorder %s17, 0
    %p38 = por %p36, %p37
    %p39 = scmp.ne.s32.totalorder %s25, %s26
    %p40 = scmp.eq.s32.totalorder %s18, 1
    %p41 = por %p39, %p40
    %p43 = scmp.ne.s32.totalorder %s26, %s42
    %p44 = scmp.eq.s32.totalorder %s18, 0
    %p45 = por %p43, %p44
    %s46 = ssub.s32 %s12, %s19
    %p47 = scmp.eq.s32.totalorder %s46, 0
    %s49 = sadd.s32 %s48, 1
    %s50 = scalar_select %p47, %s48, %s49
    %p53 = pneg %p47
    %p54 = scmp.eq.s32.totalorder %s12, 1
    %p55 = por %p53, %p54
    %p56 = scmp.ne.s32.totalorder %s48, %s51
    %p57 = scmp.eq.s32.totalorder %s12, 0
    %p58 = por %p56, %p57
    %p59 = scmp.ne.s32.totalorder %s48, %s51
    %p60 = scmp.eq.s32.totalorder %s17, 1
    %p61 = por %p59, %p60
    %p62 = scmp.ne.s32.totalorder %s51, %s52
    %p63 = scmp.eq.s32.totalorder %s17, 0
    %p64 = por %p62, %p63
    %p65 = scmp.ne.s32.totalorder %s51, %s52
    %p66 = scmp.eq.s32.totalorder %s18, 1
    %p67 = por %p65, %p66
    %p69 = scmp.ne.s32.totalorder %s52, %s68
    %p70 = scmp.eq.s32.totalorder %s18, 0
    %p71 = por %p69, %p70
    %s73 = sadd.s32 %s72, 1
    %p76 = scmp.eq.s32.totalorder %s12, 1
    %p77 = scmp.ne.s32.totalorder %s72, %s74
    %p78 = scmp.eq.s32.totalorder %s12, 0
    %p79 = por %p77, %p78
    %p80 = scmp.ne.s32.totalorder %s72, %s74
    %p81 = scmp.eq.s32.totalorder %s17, 1
    %p82 = por %p80, %p81
    %p83 = scmp.ne.s32.totalorder %s74, %s75
    %p84 = scmp.eq.s32.totalorder %s17, 0
    %p85 = por %p83, %p84
    %p86 = scmp.ne.s32.totalorder %s74, %s75
    %p87 = scmp.eq.s32.totalorder %s18, 1
    %p88 = por %p86, %p87
    %p90 = scmp.ne.s32.totalorder %s75, %s89
    %p91 = scmp.eq.s32.totalorder %s18, 0
    %p92 = por %p90, %p91
    %s94 = sadd.s32 %s93, 1
    %p97 = scmp.eq.s32.totalorder %s12, 1
    %p98 = scmp.ne.s32.totalorder %s93, %s95
    %p99 = scmp.eq.s32.totalorder %s12, 0
    %p100 = por %p98, %p99
    %p101 = scmp.ne.s32.totalorder %s93, %s95
    %p102 = scmp.eq.s32.totalorder %s17, 1
    %p103 = por %p101, %p102
    %p104 = scmp.ne.s32.totalorder %s95, %s96
    %p105 = scmp.eq.s32.totalorder %s17, 0
    %p106 = por %p104, %p105
    %p107 = scmp.ne.s32.totalorder %s95, %s96
    %p108 = scmp.eq.s32.totalorder %s18, 1
    %p109 = por %p107, %p108
    %p111 = scmp.ne.s32.totalorder %s96, %s110
    %p112 = scmp.eq.s32.totalorder %s18, 0
    %p113 = por %p111, %p112
    %s114 = ssub.s32 %s12, %s19
    %p115 = scmp.eq.s32.totalorder %s114, 0
    %s117 = sadd.s32 %s116, 1
    %s118 = scalar_select %p115, %s116, %s117
    %p121 = pneg %p115
    %p122 = scmp.eq.s32.totalorder %s12, 1
    %p123 = por %p121, %p122
    %p124 = scmp.ne.s32.totalorder %s116, %s119
    %p125 = scmp.eq.s32.totalorder %s12, 0
    %p126 = por %p124, %p125
    %p127 = scmp.ne.s32.totalorder %s116, %s119
    %p128 = scmp.eq.s32.totalorder %s17, 1
    %p129 = por %p127, %p128
    %p130 = scmp.ne.s32.totalorder %s119, %s120
    %p131 = scmp.eq.s32.totalorder %s17, 0
    %p132 = por %p130, %p131
    %p133 = scmp.ne.s32.totalorder %s119, %s120
    %p134 = scmp.eq.s32.totalorder %s18, 1
    %p135 = por %p133, %p134
    %p137 = scmp.ne.s32.totalorder %s120, %s136
    %p138 = scmp.eq.s32.totalorder %s18, 0
    %p139 = por %p137, %p138
    %s140 = ssub.s32 %s12, %s19
    %p141 = scmp.eq.s32.totalorder %s140, 0
    %s143 = sadd.s32 %s142, 1
    %s144 = scalar_select %p141, %s142, %s143
    %p147 = pneg %p141
    %p148 = scmp.eq.s32.totalorder %s12, 1
    %p149 = por %p147, %p148
    %p150 = scmp.ne.s32.totalorder %s142, %s145
    %p151 = scmp.eq.s32.totalorder %s12, 0
    %p152 = por %p150, %p151
    %p153 = scmp.ne.s32.totalorder %s142, %s145
    %p154 = scmp.eq.s32.totalorder %s17, 1
    %p155 = por %p153, %p154
    %p156 = scmp.ne.s32.totalorder %s145, %s146
    %p157 = scmp.eq.s32.totalorder %s17, 0
    %p158 = por %p156, %p157
    %p159 = scmp.ne.s32.totalorder %s145, %s146
    %p160 = scmp.eq.s32.totalorder %s18, 1
    %p161 = por %p159, %p160
    %p163 = scmp.ne.s32.totalorder %s146, %s162
    %p164 = scmp.eq.s32.totalorder %s18, 0
    %p165 = por %p163, %p164
    %p166 = scmp.le.s32.totalorder 1, %s12
    %p167 = scmp.lt.s32.totalorder %s12, 3
    %p168 = pnand %p166, %p167
    %p169 = pneg %p168
    // Predicated region
    $region9: #{_lambda_.4} parent=5 // pred_check
      _
    $region10: #{_lambda_.4} parent=5 // pred_check_branch
      %171 = sbr.rel (%p168) target = $region12
    $region11: #{_lambda_.4} parent=5 // pred_region
      %s172 = ssub.s32 %s12, 1
      // Predicated region
      $region13: #{_lambda_.4} parent=11 // pred_check
        %p173 = pneg %p85
      $region14: #{_lambda_.4} parent=11 // pred_check_branch
        %175 = sbr.rel (%p173) target = $region16
      $region15: #{_lambda_.4} parent=11 // pred_region
        _
      $region16: #{_lambda_.4} parent=11 // pred_fallthru
        _
      // Predicated region
      $region17: #{_lambda_.4} parent=11 // pred_check
        %p176 = pneg %p106
      $region18: #{_lambda_.4} parent=11 // pred_check_branch
        %178 = sbr.rel (%p176) target = $region20
      $region19: #{_lambda_.4} parent=11 // pred_region
        _
      $region20: #{_lambda_.4} parent=11 // pred_fallthru
        _
    $region12: #{_lambda_.4} parent=5 // pred_fallthru
      _
    %p179 = scmp.lt.s32.totalorder %s12, 2
    // Predicated region
    $region21: #{_lambda_.4} parent=5 // pred_check
      %p180 = pneg %p179
    $region22: #{_lambda_.4} parent=5 // pred_check_branch
      %182 = sbr.rel (%p180) target = $region24
    $region23: #{_lambda_.4} parent=5 // pred_region
      // Predicated region
      $region25: #{_lambda_.4} parent=23 // pred_check
        %p183 = pneg %p32
      $region26: #{_lambda_.4} parent=23 // pred_check_branch
        %185 = sbr.rel (%p183) target = $region28
      $region27: #{_lambda_.4} parent=23 // pred_region
        %p186 = scmp.lt.s32.totalorder %s12, 1
        %s187 = scalar_select %p186, %s12, 1
        %s188 = smul.addr %s187, 2
        %s189 = smul.addr %s188, 8
        %s190 = scalar_lea.vmem %s0, %s189
      $region28: #{_lambda_.4} parent=23 // pred_fallthru
        _
      // Predicated region
      $region29: #{_lambda_.4} parent=23 // pred_check
        %p191 = pneg %p58
      $region30: #{_lambda_.4} parent=23 // pred_check_branch
        %193 = sbr.rel (%p191) target = $region32
      $region31: #{_lambda_.4} parent=23 // pred_region
        %p194 = scmp.lt.s32.totalorder %s12, 1
        %s195 = scalar_select %p194, %s12, 1
        %s196 = smul.addr %s195, 8
        %s197 = scalar_lea.vmem %s1, %s196
      $region32: #{_lambda_.4} parent=23 // pred_fallthru
        _
    $region24: #{_lambda_.4} parent=5 // pred_fallthru
      _
    %p198 = scmp.le.s32.totalorder 1, %s12
    %p199 = scmp.lt.s32.totalorder %s12, 3
    %p200 = pnand %p198, %p199
    %p201 = pneg %p200
    // Predicated region
    $region33: #{_lambda_.4} parent=5 // pred_check
      _
    $region34: #{_lambda_.4} parent=5 // pred_check_branch
      %203 = sbr.rel (%p200) target = $region36
    $region35: #{_lambda_.4} parent=5 // pred_region
      %s204 = ssub.s32 %s12, 1
      %p205 = scmp.lt.s32.totalorder %s17, 1
      %s206 = scalar_select %p205, %s17, 1
      %s207 = smul.addr %s206, 2
      %s208 = smul.addr %s207, 8
      %s209 = scalar_lea.vmem %s0, %s208
      %p210 = pneg %p38
      %p211 = pneg %p35
      %p212 = scmp.lt.s32.totalorder %s17, 1
      %s213 = scalar_select %p212, %s17, 1
      %s214 = smul.addr %s213, 8
      %s215 = scalar_lea.vmem %s1, %s214
      %p216 = pneg %p64
      %p217 = pneg %p61
      %p218 = pneg %p85
      %p219 = pneg %p82
      %p220 = pneg %p106
      %p221 = pneg %p103
      %p222 = pneg %p132
      %p223 = pneg %p129
      %p224 = scmp.lt.s32.totalorder %s17, 1
      %s225 = scalar_select %p224, %s17, 1
      %s226 = smul.addr %s225, 4
      %s227 = smul.addr %s226, 8
      %s228 = scalar_lea.vmem %s4, %s227
      %p229 = pneg %p158
      %p230 = pneg %p155
      %p231 = scmp.lt.s32.totalorder %s17, 1
      %s232 = scalar_select %p231, %s17, 1
      %s233 = smul.addr %s232, 2
      %s234 = smul.addr %s233, 8
      %s235 = scalar_lea.vmem %s5, %s234
      %p236 = scmp.lt.s32.totalorder %s17, 1
      %s237 = scalar_select %p236, %s17, 1
      %s238 = smul.addr %s237, 2
      %s239 = smul.addr %s238, 8
      %s240 = scalar_lea.vmem %s0, %s239
      %p241 = scmp.lt.s32.totalorder %s17, 1
      %s242 = scalar_select %p241, %s17, 1
      %s243 = smul.addr %s242, 8
      %s244 = scalar_lea.vmem %s1, %s243
      %p245 = scmp.lt.s32.totalorder %s17, 1
      %s246 = scalar_select %p245, %s17, 1
      %s247 = smul.addr %s246, 4
      %s248 = smul.addr %s247, 8
      %s249 = scalar_lea.vmem %s4, %s248
      %p250 = scmp.lt.s32.totalorder %s17, 1
      %s251 = scalar_select %p250, %s17, 1
      %s252 = smul.addr %s251, 2
      %s253 = smul.addr %s252, 8
      %s254 = scalar_lea.vmem %s5, %s253
      %255 = vst [vmem:[#allocation2] sm:$0xff] 0.0
      %256 = vst [vmem:[#allocation2 + $0x8] sm:$0xff] 0.0
      %257 = vst [vmem:[#allocation2 + $0x10] sm:$0xff] 0.0
      %v258 = vld [vmem:[%s3] sm:$0x3]
      %v259 = vlaneseq
      %v260 = vand.u32 %v259, 127
      %vm261 = vcmp.eq.s32.totalorder %v260, 0
      %v262 = vsel %vm261, 1, 0
      %v263 = vcvt.s32.f32 %v262
      %vm264 = vcmp.eq.s32.totalorder %v260, 1
      %v265 = vsel %vm264, 1, 0
      %v266 = vcvt.s32.f32 %v265
      %v267 = vld [vmem:[%s2] sm:$0xff]
      %v268 = vld [vmem:[%s2 + $0x8] sm:$0xff]
      %v269 = vld [vmem:[%s240] sm:$0xff]
      %v270 = vld [vmem:[%s240 + $0x8] sm:$0xff]
      %v271 = vld [vmem:[%s244] sm:$0xff]
      %273 = vset.pattern.permute.xlu0 0
      %274 = vperm.xlu0 %273, %v271
      %v275 = vpop.permute.xlu0 %274
      %v277 = vmul.f32 %v269, %v275
      %v278 = vmul.f32 %v270, %v275
      %279 = vset.pattern.permute.xlu0 1
      %280 = vperm.xlu0 %279, %v271
      %v281 = vpop.permute.xlu0 %280
      %v283 = vadd.f32 %v277, %v281
      %v284 = vadd.f32 %v278, %v281
      %v285 = vmul.f32 %v283, 0.5
      %v286 = vmul.f32 %v284, 0.5
      %v287 = vmul.f32 %v283, 0.70710677
      %v288 = vmul.f32 %v284, 0.70710677
      %v289 = verf.f32.pop %v287
      %v290 = verf.f32.pop %v288
      %v291 = vadd.f32 %v289, 1.0
      %v292 = vadd.f32 %v290, 1.0
      %v293 = vmul.f32 %v285, %v291
      %v294 = vmul.f32 %v286, %v292
      %295 = vst [vmem:[#allocation2] sm:$0xff] %v293
      %296 = vst [vmem:[#allocation2 + $0x8] sm:$0xff] %v294
      %v297 = vld [vmem:[#allocation2] sm:$0xff]
      %v298 = vld [vmem:[#allocation2 + $0x8] sm:$0xff]
      %299 = vst [vmem:[#allocation3] sm:$0xff] %v297
      %300 = vst [vmem:[#allocation3 + $0x8] sm:$0xff] %v298
      %v301 = vld [vmem:[#allocation2] sm:$0xff]
      %v302 = vld [vmem:[#allocation2 + $0x8] sm:$0xff]
      %v303 = vld [vmem:[#allocation2 + $0x10] sm:$0xff]
      %307 = vrot.lane.b32.xlu0 %v301, 127
      %v308 = vpop.permute.xlu0 %307
      %309 = vrot.lane.b32.xlu0 %v302, 127
      %v310 = vpop.permute.xlu0 %309
      %311 = vrot.lane.b32.xlu0 %v303, 127
      %v312 = vpop.permute.xlu0 %311
      %vm313 = vcmask 1039360
      %v314 = vsel %vm313, %v308, %v310
      %v315 = vsel %vm313, %v310, %v312
      %318 = vst [vmem:[#allocation3 + $0x10] sm:$0xff] %v314
      %319 = vst [vmem:[#allocation3 + $0x18] sm:$0xff] %v315
      %v320 = vld [vmem:[#allocation2] sm:$0xff]
      %v321 = vld [vmem:[#allocation2 + $0x8] sm:$0xff]
      %v322 = vld [vmem:[#allocation2 + $0x10] sm:$0xff]
      %326 = vrot.lane.b32.xlu0 %v320, 126
      %v327 = vpop.permute.xlu0 %326
      %328 = vrot.lane.b32.xlu0 %v321, 126
      %v329 = vpop.permute.xlu0 %328
      %330 = vrot.lane.b32.xlu0 %v322, 126
      %v331 = vpop.permute.xlu0 %330
      %vm332 = vcmask 1031168
      %v333 = vsel %vm332, %v327, %v329
      %v334 = vsel %vm332, %v329, %v331
      %337 = vst [vmem:[#allocation3 + $0x20] sm:$0xff] %v333
      %338 = vst [vmem:[#allocation3 + $0x28] sm:$0xff] %v334
      %v339 = vld [vmem:[#allocation2] sm:$0xff]
      %v340 = vld [vmem:[#allocation2 + $0x8] sm:$0xff]
      %v341 = vld [vmem:[#allocation2 + $0x10] sm:$0xff]
      %345 = vrot.lane.b32.xlu0 %v339, 112
      %v346 = vpop.permute.xlu0 %345
      %347 = vrot.lane.b32.xlu0 %v340, 112
      %v348 = vpop.permute.xlu0 %347
      %349 = vrot.lane.b32.xlu0 %v341, 112
      %v350 = vpop.permute.xlu0 %349
      %vm351 = vcmask 916480
      %v352 = vsel %vm351, %v346, %v348
      %v353 = vsel %vm351, %v348, %v350
      %356 = vst [vmem:[#allocation3 + $0x30] sm:$0xff] %v352
      %357 = vst [vmem:[#allocation3 + $0x38] sm:$0xff] %v353
      %v358 = vld [vmem:[#allocation2] sm:$0xff]
      %v359 = vld [vmem:[#allocation2 + $0x8] sm:$0xff]
      %v360 = vld [vmem:[#allocation2 + $0x10] sm:$0xff]
      %364 = vrot.lane.b32.xlu0 %v358, 111
      %v365 = vpop.permute.xlu0 %364
      %366 = vrot.lane.b32.xlu0 %v359, 111
      %v367 = vpop.permute.xlu0 %366
      %368 = vrot.lane.b32.xlu0 %v360, 111
      %v369 = vpop.permute.xlu0 %368
      %vm370 = vcmask 908288
      %v371 = vsel %vm370, %v365, %v367
      %v372 = vsel %vm370, %v367, %v369
      %375 = vst [vmem:[#allocation3 + $0x40] sm:$0xff] %v371
      %376 = vst [vmem:[#allocation3 + $0x48] sm:$0xff] %v372
      %v377 = vld [vmem:[#allocation2] sm:$0xff]
      %v378 = vld [vmem:[#allocation2 + $0x8] sm:$0xff]
      %v379 = vld [vmem:[#allocation2 + $0x10] sm:$0xff]
      %383 = vrot.lane.b32.xlu0 %v377, 110
      %v384 = vpop.permute.xlu0 %383
      %385 = vrot.lane.b32.xlu0 %v378, 110
      %v386 = vpop.permute.xlu0 %385
      %387 = vrot.lane.b32.xlu0 %v379, 110
      %v388 = vpop.permute.xlu0 %387
      %vm389 = vcmask 900096
      %v390 = vsel %vm389, %v384, %v386
      %v391 = vsel %vm389, %v386, %v388
      %394 = vst [vmem:[#allocation3 + $0x50] sm:$0xff] %v390
      %395 = vst [vmem:[#allocation3 + $0x58] sm:$0xff] %v391
      %v396 = vld [vmem:[#allocation2] sm:$0xff]
      %v397 = vld [vmem:[#allocation2 + $0x8] sm:$0xff]
      %v398 = vld [vmem:[#allocation2 + $0x10] sm:$0xff]
      %402 = vrot.lane.b32.xlu0 %v396, 96
      %v403 = vpop.permute.xlu0 %402
      %404 = vrot.lane.b32.xlu0 %v397, 96
      %v405 = vpop.permute.xlu0 %404
      %406 = vrot.lane.b32.xlu0 %v398, 96
      %v407 = vpop.permute.xlu0 %406
      %vm408 = vcmask 785408
      %v409 = vsel %vm408, %v403, %v405
      %v410 = vsel %vm408, %v405, %v407
      %413 = vst [vmem:[#allocation3 + $0x60] sm:$0xff] %v409
      %414 = vst [vmem:[#allocation3 + $0x68] sm:$0xff] %v410
      %v415 = vld [vmem:[#allocation2] sm:$0xff]
      %v416 = vld [vmem:[#allocation2 + $0x8] sm:$0xff]
      %v417 = vld [vmem:[#allocation2 + $0x10] sm:$0xff]
      %421 = vrot.lane.b32.xlu0 %v415, 95
      %v422 = vpop.permute.xlu0 %421
      %423 = vrot.lane.b32.xlu0 %v416, 95
      %v424 = vpop.permute.xlu0 %423
      %425 = vrot.lane.b32.xlu0 %v417, 95
      %v426 = vpop.permute.xlu0 %425
      %vm427 = vcmask 777216
      %v428 = vsel %vm427, %v422, %v424
      %v429 = vsel %vm427, %v424, %v426
      %432 = vst [vmem:[#allocation3 + $0x70] sm:$0xff] %v428
      %433 = vst [vmem:[#allocation3 + $0x78] sm:$0xff] %v429
      %v434 = vld [vmem:[#allocation2] sm:$0xff]
      %v435 = vld [vmem:[#allocation2 + $0x8] sm:$0xff]
      %v436 = vld [vmem:[#allocation2 + $0x10] sm:$0xff]
      %440 = vrot.lane.b32.xlu0 %v434, 94
      %v441 = vpop.permute.xlu0 %440
      %442 = vrot.lane.b32.xlu0 %v435, 94
      %v443 = vpop.permute.xlu0 %442
      %444 = vrot.lane.b32.xlu0 %v436, 94
      %v445 = vpop.permute.xlu0 %444
      %vm446 = vcmask 769024
      %v447 = vsel %vm446, %v441, %v443
      %v448 = vsel %vm446, %v443, %v445
      %451 = vst [vmem:[#allocation3 + $0x80] sm:$0xff] %v447
      %452 = vst [vmem:[#allocation3 + $0x88] sm:$0xff] %v448
      %v453 = vld [vmem:[#allocation3] sm:$0xff]
      %v454 = vld [vmem:[#allocation3 + $0x8] sm:$0xff]
      %v455 = vld [vmem:[#allocation3 + $0x10] sm:$0xff]
      %v456 = vld [vmem:[#allocation3 + $0x18] sm:$0xff]
      %v457 = vld [vmem:[#allocation3 + $0x20] sm:$0xff]
      %v458 = vld [vmem:[#allocation3 + $0x28] sm:$0xff]
      %v459 = vld [vmem:[#allocation3 + $0x30] sm:$0xff]
      %v460 = vld [vmem:[#allocation3 + $0x38] sm:$0xff]
      %v461 = vld [vmem:[#allocation3 + $0x40] sm:$0xff]
      %v462 = vld [vmem:[#allocation3 + $0x48] sm:$0xff]
      %v463 = vld [vmem:[#allocation3 + $0x50] sm:$0xff]
      %v464 = vld [vmem:[#allocation3 + $0x58] sm:$0xff]
      %v465 = vld [vmem:[#allocation3 + $0x60] sm:$0xff]
      %v466 = vld [vmem:[#allocation3 + $0x68] sm:$0xff]
      %v467 = vld [vmem:[#allocation3 + $0x70] sm:$0xff]
      %v468 = vld [vmem:[#allocation3 + $0x78] sm:$0xff]
      %v469 = vld [vmem:[#allocation3 + $0x80] sm:$0xff]
      %v470 = vld [vmem:[#allocation3 + $0x88] sm:$0xff]
      %vm471 = vcmask 588800
      %v473 = vsel %vm471, %v267, 0
      %v476 = vsel %vm471, %v268, 0
      %478 = vmatprep.subr.mxu0 %v454
      %479 = vmatpush1.msra.mxu0 %v453
      %480 = vmatprep.subr.mxu0 %v456
      %481 = vmatpush1.msra.mxu0 %v455
      %482 = vmatprep.subr.mxu0 %v458
      %483 = vmatpush1.msra.mxu0 %v457
      %484 = vmatprep.subr.mxu0 %v460
      %485 = vmatpush1.msra.mxu0 %v459
      %486 = vmatprep.subr.mxu0 %v462
      %487 = vmatpush1.msra.mxu0 %v461
      %488 = vmatprep.subr.mxu0 %v464
      %489 = vmatpush1.msra.mxu0 %v463
      %490 = vmatprep.subr.mxu0 %v466
      %491 = vmatpush1.msra.mxu0 %v465
      %492 = vmatprep.subr.mxu0 %v468
      %493 = vmatpush1.msra.mxu0 %v467
      %494 = vmatprep.subr.mxu0 %v470
      %495 = vmatpush1.msra.mxu0 %v469
      %496 = vmatprep.subr.mxu0 0.0
      %497 = vmatpush1.msra.mxu0 0.0
      %498 = vmatprep.subr.mxu0 0.0
      %499 = vmatpush1.msra.mxu0 0.0
      %500 = vmatprep.subr.mxu0 0.0
      %501 = vmatpush1.msra.mxu0 0.0
      %502 = vmatprep.subr.mxu0 0.0
      %503 = vmatpush1.msra.mxu0 0.0
      %504 = vmatprep.subr.mxu0 0.0
      %505 = vmatpush1.msra.mxu0 0.0
      %506 = vmatprep.subr.mxu0 0.0
      %507 = vmatpush1.msra.mxu0 0.0
      %508 = vmatprep.subr.mxu0 0.0
      %509 = vmatpush1.msra.mxu0 0.0
      %510 = vmatprep.subr.mxu0 0.0
      %511 = vmatpush1.msra.mxu0 0.0
      %512 = vmatprep.subr.mxu0 0.0
      %513 = vmatpush1.msra.mxu0 0.0
      %514 = vmatprep.subr.mxu0 0.0
      %515 = vmatpush1.msra.mxu0 0.0
      %516 = vmatprep.subr.mxu0 0.0
      %517 = vmatpush1.msra.mxu0 0.0
      %518 = vmatprep.subr.mxu0 0.0
      %519 = vmatpush1.msra.mxu0 0.0
      %520 = vmatprep.subr.mxu0 0.0
      %521 = vmatpush1.msra.mxu0 0.0
      %522 = vmatprep.subr.mxu0 0.0
      %523 = vmatpush1.msra.mxu0 0.0
      %524 = vmatprep.subr.mxu0 0.0
      %525 = vmatpush1.msra.mxu0 0.0
      %526 = vmatprep.subr.mxu0 0.0
      %527 = vmatpush1.msra.mxu0 0.0
      %528 = vmatprep.subr.mxu0 0.0
      %529 = vmatpush1.msra.mxu0 0.0
      %530 = vmatprep.subr.mxu0 0.0
      %531 = vmatpush1.msra.mxu0 0.0
      %532 = vmatprep.subr.mxu0 0.0
      %533 = vmatpush1.msra.mxu0 0.0
      %534 = vmatprep.subr.mxu0 0.0
      %535 = vmatpush1.msra.mxu0 0.0
      %536 = vmatprep.subr.mxu0 0.0
      %537 = vmatpush1.msra.mxu0 0.0
      %538 = vmatprep.subr.mxu0 0.0
      %539 = vmatpush1.msra.mxu0 0.0
      %540 = vmatprep.subr.mxu0 0.0
      %541 = vmatpush1.msra.mxu0 0.0
      %542 = vmatprep.mubr.f32.mxu0 0.0
      %543 = vmatmul.mubr.f32.gmra.mrb[0].mxu0 %v473
      %v544 = vpop.f32.mrb[0].mxu0
      %v545 = vadd.f32 0.0, %v544
      %v546 = vpop.f32.mrb[0].mxu0
      %v547 = vadd.f32 0.0, %v546
      %548 = vmatprep.mubr.f32.mxu0 0.0
      %549 = vmatmul.mubr.f32.gmra.mrb[0].mxu0 %v476
      %v550 = vpop.f32.mrb[0].mxu0
      %v551 = vadd.f32 0.0, %v550
      %v552 = vpop.f32.mrb[0].mxu0
      %v553 = vadd.f32 0.0, %v552
      %554 = vdwg.mxu0
      %555 = vst [vmem:[%s249] sm:$0xff] %v545
      %556 = vst [vmem:[%s249 + $0x8] sm:$0xff] %v547
      %557 = vst [vmem:[%s249 + $0x10] sm:$0xff] %v551
      %558 = vst [vmem:[%s249 + $0x18] sm:$0xff] %v553
      %v560 = vlaneseq
      %v561 = vshrl.u32 %v560, 7
      %v562 = vsub.s32 0, %v561
      %v563 = vrot.slane %v258, %v562
      %v564 = vlaneseq
      %v565 = vshrl.u32 %v564, 7
      %v566 = vsub.s32 1, %v565
      %v567 = vrot.slane %v258, %v566
      %v570 = vmul.f32 %v545, %v563
      %v571 = vmul.f32 %v547, %v567
      %v572 = vmul.f32 %v551, %v563
      %v573 = vmul.f32 %v553, %v567
      %v574 = vadd.f32 %v570, %v571
      %575 = vadd.xlane.f32.xlu0 %v574
      %v576 = vpop.xlane.xlu0 %575
      %v577 = vadd.f32 %v572, %v573
      %578 = vadd.xlane.f32.xlu0 %v577
      %v579 = vpop.xlane.xlu0 %578
      %v580 = vmul.f32 %v570, %v545
      %v581 = vmul.f32 %v571, %v547
      %v582 = vmul.f32 %v572, %v551
      %v583 = vmul.f32 %v573, %v553
      %v584 = vadd.f32 %v580, %v581
      %585 = vadd.xlane.f32.xlu0 %v584
      %v586 = vpop.xlane.xlu0 %585
      %v587 = vadd.f32 %v582, %v583
      %588 = vadd.xlane.f32.xlu0 %v587
      %v589 = vpop.xlane.xlu0 %588
      %v590 = vmul.f32 %v576, %v263
      %v591 = vmul.f32 %v579, %v263
      %v592 = vmul.f32 %v586, %v266
      %v593 = vmul.f32 %v589, %v266
      %v594 = vadd.f32 %v590, %v592
      %v595 = vadd.f32 %v591, %v593
      %596 = vst [vmem:[%s254] sm:$0xff] %v594
      %597 = vst [vmem:[%s254 + $0x8] sm:$0xff] %v595
      %p598 = scmp.lt.s32.totalorder %s17, 1
      %s599 = scalar_select %p598, %s17, 1
      %s600 = smul.addr %s599, 4
      %s601 = smul.addr %s600, 8
      %s602 = scalar_lea.vmem %s4, %s601
      %p603 = scmp.lt.s32.totalorder %s17, 1
      %s604 = scalar_select %p603, %s17, 1
      %s605 = smul.addr %s604, 2
      %s606 = smul.addr %s605, 8
      %s607 = scalar_lea.vmem %s5, %s606
      // Predicated region
      $region37: #{_lambda_.4} parent=35 // pred_check
        %p608 = pneg %p129
      $region38: #{_lambda_.4} parent=35 // pred_check_branch
        %610 = sbr.rel (%p608) target = $region40
      $region39: #{_lambda_.4} parent=35 // pred_region
        _
      $region40: #{_lambda_.4} parent=35 // pred_fallthru
        _
      // Predicated region
      $region41: #{_lambda_.4} parent=35 // pred_check
        %p611 = pneg %p155
      $region42: #{_lambda_.4} parent=35 // pred_check_branch
        %613 = sbr.rel (%p611) target = $region44
      $region43: #{_lambda_.4} parent=35 // pred_region
        _
      $region44: #{_lambda_.4} parent=35 // pred_fallthru
        _
    $region36: #{_lambda_.4} parent=5 // pred_fallthru
      _
    %p614 = scmp.le.s32.totalorder 2, %s12
    // Predicated region
    $region45: #{_lambda_.4} parent=5 // pred_check
      %p615 = pneg %p614
    $region46: #{_lambda_.4} parent=5 // pred_check_branch
      %617 = sbr.rel (%p615) target = $region48
    $region47: #{_lambda_.4} parent=5 // pred_region
      %s618 = ssub.s32 %s12, 2
      // Predicated region
      $region49: #{_lambda_.4} parent=47 // pred_check
        %p619 = pneg %p135
      $region50: #{_lambda_.4} parent=47 // pred_check_branch
        %621 = sbr.rel (%p619) target = $region52
      $region51: #{_lambda_.4} parent=47 // pred_region
        %p622 = scmp.lt.s32.totalorder %s18, 1
        %s623 = scalar_select %p622, %s18, 1
        %s624 = smul.addr %s623, 4
        %s625 = smul.addr %s624, 8
        %s626 = scalar_lea.vmem %s4, %s625
      $region52: #{_lambda_.4} parent=47 // pred_fallthru
        _
      // Predicated region
      $region53: #{_lambda_.4} parent=47 // pred_check
        %p627 = pneg %p161
      $region54: #{_lambda_.4} parent=47 // pred_check_branch
        %629 = sbr.rel (%p627) target = $region56
      $region55: #{_lambda_.4} parent=47 // pred_region
        %p630 = scmp.lt.s32.totalorder %s18, 1
        %s631 = scalar_select %p630, %s18, 1
        %s632 = smul.addr %s631, 2
        %s633 = smul.addr %s632, 8
        %s634 = scalar_lea.vmem %s5, %s633
      $region56: #{_lambda_.4} parent=47 // pred_fallthru
        _
    $region48: #{_lambda_.4} parent=5 // pred_fallthru
      _
  $region6: #{_lambda_.4} parent=0 // loop_footer
    %s16 = sadd.s32 1, %s12
  $region7: #{_lambda_.4} parent=0 // loop_footer_branch
    %11 = sbr.rel target = $region3
  $region8: #{_lambda_.4} parent=0 // loop_exit
    _

</llo_original>
